<compile_context>
chip_gen: v5e
topology: v5e:2x2
jax: 0.10.0
libtpu: 0.0.40
codegen_flags: <defaults>
</compile_context>

<pallas_src>
import numpy as np
import jax
import jax.numpy as jnp
from jax import lax
from jax.experimental import pallas as pl
from jax.experimental.pallas import tpu as pltpu

# ---- model hyper-parameters (from the PyTorch module) ----------------------
ELU_ALPHA = 1.0
LEAKY_SLOPE = 0.01

N_NODES = 10          # len(subset) = len(np.arange(0, 10, 1))
NUM_FEATURES = 20
H1, H2, H3, H4, H5 = 2, 3, 2, 3, 2 * 20
HIDDEN_DIMS = (H1, H2, H3, H4, H5)
N_LAYERS = 5

# padded sizes for the TPU kernel
N_PAD = 16            # nodes        -> multiple of 8 sublanes
K_PAD = 32            # in-features  -> 32 sublanes (max real in-dim is 20)
F_PAD = 128           # out-features -> one lane tile

_PREC = lax.Precision.HIGHEST


# ---- Pallas kernel: the whole GCN hot path ----------------------------------
def _gcn_kernel(p_ref, x_ref, w_ref, h_ref, z_ref):
    """p_ref:(16,16) propagation matrix, x_ref:(16,128) features,
       w_ref:(5,32,128) stacked W_l^T (in,out layout, zero padded),
       h_ref:(5,16,128) stacked hidden outputs,
       z_ref:(16,128) sigmoid decoder output (only lanes [:16] are written)."""
    f32 = jnp.float32
    P = p_ref[...]                                   # D^-1/2 (A+I) D^-1/2, padded

    def layer(h_prev, l):
        # t = P @ h_prev  (16,128); padded cols of h_prev are zero, so t[:, :32]
        # carries all meaningful data and the (32,128) weight tile is enough.
        t = jnp.dot(P, h_prev, preferred_element_type=f32, precision=_PREC)
        return jnp.dot(t[:, :K_PAD], w_ref[l],
                       preferred_element_type=f32, precision=_PREC)

    # layer 1: LeakyReLU( P @ x @ W1^T )
    a1 = layer(x_ref[...], 0)
    h1 = jnp.where(a1 > 0, a1, LEAKY_SLOPE * a1)
    h_ref[0] = h1

    # layer 2: ELU( P @ h1 @ W2^T )
    a2 = layer(h1, 1)
    h2 = jnp.where(a2 > 0, a2, ELU_ALPHA * (jnp.exp(a2) - 1.0))
    h_ref[1] = h2

    # layer 3: SiLU( P @ h2 @ W3^T )
    a3 = layer(h2, 2)
    h3 = a3 * (1.0 / (1.0 + jnp.exp(-a3)))
    h_ref[2] = h3

    # layer 4: ReLU( P @ h3 @ W4^T )
    a4 = layer(h3, 3)
    h4 = jnp.maximum(a4, 0.0)
    h_ref[3] = h4

    # layer 5 (no activation): P @ h4 @ W5^T
    h5 = layer(h4, 4)
    h_ref[4] = h5

    # link-prediction decoder: sigmoid(h5 @ h5^T).
    # Contract dim 1 of both operands -> transposed-RHS matmul, no h5.T in vregs.
    h6 = lax.dot_general(h5, h5,
                         dimension_numbers=(((1,), (1,)), ((), ())),
                         preferred_element_type=f32, precision=_PREC)   # (16,16)
    # Only the valid 16-lane block is stored; padded lanes of z_ref are left
    # uninitialized by contract (wrapper slices z[:n, :n]).
    z_ref[:, :N_PAD] = 1.0 / (1.0 + jnp.exp(-h6))


# ---- wrapper helpers ---------------------------------------------------------
def _pad2d(a, rows, cols):
    a = jnp.asarray(a, jnp.float32)
    return jnp.zeros((rows, cols), dtype=jnp.float32).at[: a.shape[0], : a.shape[1]].set(a)


def prepare_weights(weights):
    """Pad + transpose W1..W5 (nn.Linear (out,in) layout) into one stacked
    (5, K_PAD, F_PAD) array with (in, out) layout inside the kernel.
    Weights are constants across forward passes -> call once and cache."""
    return jnp.stack(
        [_pad2d(weights[f"W{i}"].T, K_PAD, F_PAD) for i in range(1, 6)], axis=0
    )


def prepare_graph(edge_index):
    """Static per-graph preprocessing (edge_index does not change per forward):
    dense 0/1 adjacency, self-loops, symmetric normalization, padding.
    Returns the padded (N_PAD, N_PAD) propagation matrix; call once and cache."""
    n = N_NODES
    A = jnp.zeros((n, n), dtype=jnp.float32)
    A = A.at[edge_index[0], edge_index[1]].set(1.0)
    A = (A > 0).astype(jnp.float32)
    A_hat = A + jnp.eye(n, dtype=jnp.float32)
    deg = jnp.sum(A, axis=0) + 1.0
    d_inv = 1.0 / jnp.sqrt(deg)
    P = (d_inv[:, None] * A_hat) * d_inv[None, :]        # D^-1/2 (A+I) D^-1/2
    return _pad2d(P, N_PAD, N_PAD)


@jax.jit
def _gcn_forward_padded(x, p_pad, w_stacked):
    """Jitted hot path: one pad + one pallas_call + static output slices."""
    x_pad = _pad2d(x, N_PAD, F_PAD)

    vmem = pl.BlockSpec(memory_space=pltpu.MemorySpace.VMEM)
    out_shape = (
        jax.ShapeDtypeStruct((N_LAYERS, N_PAD, F_PAD), jnp.float32),  # h1..h5
        jax.ShapeDtypeStruct((N_PAD, F_PAD), jnp.float32),            # z (padded)
    )

    h_stk, z_pad = pl.pallas_call(
        _gcn_kernel,
        out_shape=out_shape,
        in_specs=[vmem, vmem, vmem],
        out_specs=(vmem, vmem),
    )(p_pad, x_pad, w_stacked)

    h = tuple(h_stk[i, :N_NODES, : HIDDEN_DIMS[i]] for i in range(N_LAYERS))
    z = z_pad[:N_NODES, :N_NODES]
    return h, z


def gcn_forward(x, p_pad, w_stacked):
    """Forward pass matching the PyTorch module.

    x:          (N_NODES, NUM_FEATURES) float32 node features
    p_pad:      output of prepare_graph(edge_index)   (cached)
    w_stacked:  output of prepare_weights(weights)    (cached)

    Returns (h_list, z): h_list = [h0..h5], z = sigmoid(h5 @ h5^T).
    """
    h, z = _gcn_forward_padded(x, p_pad, w_stacked)
    return [x] + list(h), z


# ---- pure-JAX reference (for correctness check) ------------------------------
def gcn_reference(x, edge_index, weights):
    n = N_NODES
    A = jnp.zeros((n, n), dtype=jnp.float32)
    A = A.at[edge_index[0], edge_index[1]].set(1.0)
    A = (A > 0).astype(jnp.float32)
    A_hat = A + jnp.eye(n)
    deg = jnp.sum(A, axis=0) + 1.0
    D_inv = jnp.diag(1.0 / jnp.sqrt(deg))
    P = D_inv @ A_hat @ D_inv

    def leaky(v): return jnp.where(v > 0, v, LEAKY_SLOPE * v)
    def elu(v): return jnp.where(v > 0, v, ELU_ALPHA * (jnp.exp(v) - 1.0))
    def silu(v): return v * jax.nn.sigmoid(v)

    h1 = leaky((P @ x) @ weights["W1"].T)
    h2 = elu((P @ h1) @ weights["W2"].T)
    h3 = silu((P @ h2) @ weights["W3"].T)
    h4 = jnp.maximum((P @ h3) @ weights["W4"].T, 0.0)
    h5 = (P @ h4) @ weights["W5"].T
    z = jax.nn.sigmoid(h5 @ h5.T)
    return [x, h1, h2, h3, h4, h5], z


if __name__ == "__main__":
    key = jax.random.PRNGKey(0)
    k_x, k1, k2, k3, k4, k5 = jax.random.split(key, 6)

    # node features (10 nodes, 20 features)
    x = jax.random.normal(k_x, (N_NODES, NUM_FEATURES), dtype=jnp.float32)

    # deterministic small undirected graph on 10 nodes: ring + a few chords
    # TODO(synk): networkx subgraph / to_dense_adj from the original script is
    # replaced by an in-script edge list (graph construction has no Pallas role).
    src = np.array([0, 1, 2, 3, 4, 5, 6, 7, 8, 9, 0, 2, 4, 1], dtype=np.int32)
    dst = np.array([1, 2, 3, 4, 5, 6, 7, 8, 9, 0, 5, 7, 9, 6], dtype=np.int32)
    edge_index = jnp.asarray(
        np.stack([np.concatenate([src, dst]), np.concatenate([dst, src])]),
        dtype=jnp.int32,
    )

    # deterministic weights, nn.Linear layout (out_features, in_features), bias=False
    def init_w(k, out_f, in_f):
        bound = 1.0 / np.sqrt(in_f)
        return jax.random.uniform(k, (out_f, in_f), jnp.float32, -bound, bound)

    weights = {
        "W1": init_w(k1, H1, NUM_FEATURES),
        "W2": init_w(k2, H2, H1),
        "W3": init_w(k3, H3, H2),
        "W4": init_w(k4, H4, H3),
        "W5": init_w(k5, H5, H4),
    }

    # static preprocessing: done once, cached across forward passes
    w_stacked = jax.block_until_ready(prepare_weights(weights))
    p_pad = jax.block_until_ready(prepare_graph(edge_index))

    h_list, z = gcn_forward(x, p_pad, w_stacked)
    jax.block_until_ready(z)

    h_ref, z_ref = gcn_reference(x, edge_index, weights)
    for a, b in zip(h_list, h_ref):
        np.testing.assert_allclose(np.asarray(a), np.asarray(b), rtol=1e-5, atol=1e-5)
    np.testing.assert_allclose(np.asarray(z), np.asarray(z_ref), rtol=1e-5, atol=1e-5)

    print("KERNEL_OK")
</pallas_src>

<mosaic_0001>
module attributes {stable_mosaic.version = 11 : i64} {
  func.func @_gcn_kernel(%arg0: memref<16x16xf32, #tpu.memory_space<vmem>>, %arg1: memref<16x128xf32, #tpu.memory_space<vmem>>, %arg2: memref<5x32x128xf32, #tpu.memory_space<vmem>>, %arg3: memref<5x16x128xf32, #tpu.memory_space<vmem>>, %arg4: memref<16x128xf32, #tpu.memory_space<vmem>>) attributes {dimension_semantics = [], scalar_prefetch = 0 : i64, scratch_operands = 0 : i64, tpu.core_type = #tpu.core_type<tc>} {
    %c0 = arith.constant 0 : index
    %c0_0 = arith.constant 0 : index
    %0 = vector.load %arg0[%c0, %c0_0] : memref<16x16xf32, #tpu.memory_space<vmem>>, vector<16x16xf32>
    %c0_1 = arith.constant 0 : index
    %c0_2 = arith.constant 0 : index
    %1 = vector.load %arg1[%c0_1, %c0_2] : memref<16x128xf32, #tpu.memory_space<vmem>>, vector<16x128xf32>
    %cst = arith.constant dense<0.000000e+00> : vector<16x128xf32>
    %2 = tpu.matmul %0, %1, %cst {dimension_numbers = #tpu.dot_dimension_numbers<[1], [0], [0], [1], [0, 0, 1, 1], [], []>, precision = #tpu.contract_precision<fp32>} : vector<16x16xf32>, vector<16x128xf32>, vector<16x128xf32> -> vector<16x128xf32>
    %3 = vector.extract_strided_slice %2 {offsets = [0, 0], sizes = [16, 32], strides = [1, 1]} : vector<16x128xf32> to vector<16x32xf32>
    %c0_3 = arith.constant 0 : index
    %c0_4 = arith.constant 0 : index
    %c0_5 = arith.constant 0 : index
    %4 = vector.load %arg2[%c0_3, %c0_4, %c0_5] : memref<5x32x128xf32, #tpu.memory_space<vmem>>, vector<1x32x128xf32>
    %5 = vector.shape_cast %4 : vector<1x32x128xf32> to vector<32x128xf32>
    %cst_6 = arith.constant dense<0.000000e+00> : vector<16x128xf32>
    %6 = tpu.matmul %3, %5, %cst_6 {dimension_numbers = #tpu.dot_dimension_numbers<[1], [0], [0], [1], [0, 0, 1, 1], [], []>, precision = #tpu.contract_precision<fp32>} : vector<16x32xf32>, vector<32x128xf32>, vector<16x128xf32> -> vector<16x128xf32>
    %cst_7 = arith.constant 0.000000e+00 : f32
    %7 = vector.broadcast %cst_7 : f32 to vector<16x128xf32>
    %8 = arith.cmpf ogt, %6, %7 : vector<16x128xf32>
    %cst_8 = arith.constant 0.00999999977 : f32
    %9 = vector.broadcast %cst_8 : f32 to vector<16x128xf32>
    %10 = arith.mulf %9, %6 : vector<16x128xf32>
    %11 = arith.select %8, %6, %10 : vector<16x128xi1>, vector<16x128xf32>
    %c0_9 = arith.constant 0 : index
    %c0_10 = arith.constant 0 : index
    %c0_11 = arith.constant 0 : index
    %12 = vector.load %arg3[%c0_9, %c0_10, %c0_11] : memref<5x16x128xf32, #tpu.memory_space<vmem>>, vector<1x16x128xf32>
    %13 = vector.shape_cast %12 : vector<1x16x128xf32> to vector<16x128xf32>
    %14 = vector.shape_cast %11 : vector<16x128xf32> to vector<1x16x128xf32>
    tpu.vector_store %arg3[%c0_9, %c0_10, %c0_11], %14 {strides = array<i32>} : memref<5x16x128xf32, #tpu.memory_space<vmem>>, vector<1x16x128xf32>,
    %cst_12 = arith.constant dense<0.000000e+00> : vector<16x128xf32>
    %15 = tpu.matmul %0, %11, %cst_12 {dimension_numbers = #tpu.dot_dimension_numbers<[1], [0], [0], [1], [0, 0, 1, 1], [], []>, precision = #tpu.contract_precision<fp32>} : vector<16x16xf32>, vector<16x128xf32>, vector<16x128xf32> -> vector<16x128xf32>
    %16 = vector.extract_strided_slice %15 {offsets = [0, 0], sizes = [16, 32], strides = [1, 1]} : vector<16x128xf32> to vector<16x32xf32>
    %c1 = arith.constant 1 : index
    %c0_13 = arith.constant 0 : index
    %c0_14 = arith.constant 0 : index
    %17 = vector.load %arg2[%c1, %c0_13, %c0_14] : memref<5x32x128xf32, #tpu.memory_space<vmem>>, vector<1x32x128xf32>
    %18 = vector.shape_cast %17 : vector<1x32x128xf32> to vector<32x128xf32>
    %cst_15 = arith.constant dense<0.000000e+00> : vector<16x128xf32>
    %19 = tpu.matmul %16, %18, %cst_15 {dimension_numbers = #tpu.dot_dimension_numbers<[1], [0], [0], [1], [0, 0, 1, 1], [], []>, precision = #tpu.contract_precision<fp32>} : vector<16x32xf32>, vector<32x128xf32>, vector<16x128xf32> -> vector<16x128xf32>
    %cst_16 = arith.constant 0.000000e+00 : f32
    %20 = vector.broadcast %cst_16 : f32 to vector<16x128xf32>
    %21 = arith.cmpf ogt, %19, %20 : vector<16x128xf32>
    %22 = math.exp %19 : vector<16x128xf32>
    %cst_17 = arith.constant 1.000000e+00 : f32
    %23 = vector.broadcast %cst_17 : f32 to vector<16x128xf32>
    %24 = arith.subf %22, %23 : vector<16x128xf32>
    %cst_18 = arith.constant 1.000000e+00 : f32
    %25 = vector.broadcast %cst_18 : f32 to vector<16x128xf32>
    %26 = arith.mulf %25, %24 : vector<16x128xf32>
    %27 = arith.select %21, %19, %26 : vector<16x128xi1>, vector<16x128xf32>
    %c1_19 = arith.constant 1 : index
    %c0_20 = arith.constant 0 : index
    %c0_21 = arith.constant 0 : index
    %28 = vector.load %arg3[%c1_19, %c0_20, %c0_21] : memref<5x16x128xf32, #tpu.memory_space<vmem>>, vector<1x16x128xf32>
    %29 = vector.shape_cast %28 : vector<1x16x128xf32> to vector<16x128xf32>
    %30 = vector.shape_cast %27 : vector<16x128xf32> to vector<1x16x128xf32>
    tpu.vector_store %arg3[%c1_19, %c0_20, %c0_21], %30 {strides = array<i32>} : memref<5x16x128xf32, #tpu.memory_space<vmem>>, vector<1x16x128xf32>,
    %cst_22 = arith.constant dense<0.000000e+00> : vector<16x128xf32>
    %31 = tpu.matmul %0, %27, %cst_22 {dimension_numbers = #tpu.dot_dimension_numbers<[1], [0], [0], [1], [0, 0, 1, 1], [], []>, precision = #tpu.contract_precision<fp32>} : vector<16x16xf32>, vector<16x128xf32>, vector<16x128xf32> -> vector<16x128xf32>
    %32 = vector.extract_strided_slice %31 {offsets = [0, 0], sizes = [16, 32], strides = [1, 1]} : vector<16x128xf32> to vector<16x32xf32>
    %c2 = arith.constant 2 : index
    %c0_23 = arith.constant 0 : index
    %c0_24 = arith.constant 0 : index
    %33 = vector.load %arg2[%c2, %c0_23, %c0_24] : memref<5x32x128xf32, #tpu.memory_space<vmem>>, vector<1x32x128xf32>
    %34 = vector.shape_cast %33 : vector<1x32x128xf32> to vector<32x128xf32>
    %cst_25 = arith.constant dense<0.000000e+00> : vector<16x128xf32>
    %35 = tpu.matmul %32, %34, %cst_25 {dimension_numbers = #tpu.dot_dimension_numbers<[1], [0], [0], [1], [0, 0, 1, 1], [], []>, precision = #tpu.contract_precision<fp32>} : vector<16x32xf32>, vector<32x128xf32>, vector<16x128xf32> -> vector<16x128xf32>
    %cst_26 = arith.constant 0.000000e+00 : f32
    %36 = vector.broadcast %cst_26 : f32 to vector<16x128xf32>
    %37 = arith.subf %36, %35 : vector<16x128xf32>
    %38 = math.exp %37 : vector<16x128xf32>
    %cst_27 = arith.constant 1.000000e+00 : f32
    %39 = vector.broadcast %cst_27 : f32 to vector<16x128xf32>
    %40 = arith.addf %39, %38 : vector<16x128xf32>
    %cst_28 = arith.constant 1.000000e+00 : f32
    %41 = vector.broadcast %cst_28 : f32 to vector<16x128xf32>
    %42 = arith.divf %41, %40 : vector<16x128xf32>
    %43 = arith.mulf %35, %42 : vector<16x128xf32>
    %c2_29 = arith.constant 2 : index
    %c0_30 = arith.constant 0 : index
    %c0_31 = arith.constant 0 : index
    %44 = vector.load %arg3[%c2_29, %c0_30, %c0_31] : memref<5x16x128xf32, #tpu.memory_space<vmem>>, vector<1x16x128xf32>
    %45 = vector.shape_cast %44 : vector<1x16x128xf32> to vector<16x128xf32>
    %46 = vector.shape_cast %43 : vector<16x128xf32> to vector<1x16x128xf32>
    tpu.vector_store %arg3[%c2_29, %c0_30, %c0_31], %46 {strides = array<i32>} : memref<5x16x128xf32, #tpu.memory_space<vmem>>, vector<1x16x128xf32>,
    %cst_32 = arith.constant dense<0.000000e+00> : vector<16x128xf32>
    %47 = tpu.matmul %0, %43, %cst_32 {dimension_numbers = #tpu.dot_dimension_numbers<[1], [0], [0], [1], [0, 0, 1, 1], [], []>, precision = #tpu.contract_precision<fp32>} : vector<16x16xf32>, vector<16x128xf32>, vector<16x128xf32> -> vector<16x128xf32>
    %48 = vector.extract_strided_slice %47 {offsets = [0, 0], sizes = [16, 32], strides = [1, 1]} : vector<16x128xf32> to vector<16x32xf32>
    %c3 = arith.constant 3 : index
    %c0_33 = arith.constant 0 : index
    %c0_34 = arith.constant 0 : index
    %49 = vector.load %arg2[%c3, %c0_33, %c0_34] : memref<5x32x128xf32, #tpu.memory_space<vmem>>, vector<1x32x128xf32>
    %50 = vector.shape_cast %49 : vector<1x32x128xf32> to vector<32x128xf32>
    %cst_35 = arith.constant dense<0.000000e+00> : vector<16x128xf32>
    %51 = tpu.matmul %48, %50, %cst_35 {dimension_numbers = #tpu.dot_dimension_numbers<[1], [0], [0], [1], [0, 0, 1, 1], [], []>, precision = #tpu.contract_precision<fp32>} : vector<16x32xf32>, vector<32x128xf32>, vector<16x128xf32> -> vector<16x128xf32>
    %cst_36 = arith.constant 0.000000e+00 : f32
    %52 = vector.broadcast %cst_36 : f32 to vector<16x128xf32>
    %53 = arith.maximumf %51, %52 : vector<16x128xf32>
    %c3_37 = arith.constant 3 : index
    %c0_38 = arith.constant 0 : index
    %c0_39 = arith.constant 0 : index
    %54 = vector.load %arg3[%c3_37, %c0_38, %c0_39] : memref<5x16x128xf32, #tpu.memory_space<vmem>>, vector<1x16x128xf32>
    %55 = vector.shape_cast %54 : vector<1x16x128xf32> to vector<16x128xf32>
    %56 = vector.shape_cast %53 : vector<16x128xf32> to vector<1x16x128xf32>
    tpu.vector_store %arg3[%c3_37, %c0_38, %c0_39], %56 {strides = array<i32>} : memref<5x16x128xf32, #tpu.memory_space<vmem>>, vector<1x16x128xf32>,
    %cst_40 = arith.constant dense<0.000000e+00> : vector<16x128xf32>
    %57 = tpu.matmul %0, %53, %cst_40 {dimension_numbers = #tpu.dot_dimension_numbers<[1], [0], [0], [1], [0, 0, 1, 1], [], []>, precision = #tpu.contract_precision<fp32>} : vector<16x16xf32>, vector<16x128xf32>, vector<16x128xf32> -> vector<16x128xf32>
    %58 = vector.extract_strided_slice %57 {offsets = [0, 0], sizes = [16, 32], strides = [1, 1]} : vector<16x128xf32> to vector<16x32xf32>
    %c4 = arith.constant 4 : index
    %c0_41 = arith.constant 0 : index
    %c0_42 = arith.constant 0 : index
    %59 = vector.load %arg2[%c4, %c0_41, %c0_42] : memref<5x32x128xf32, #tpu.memory_space<vmem>>, vector<1x32x128xf32>
    %60 = vector.shape_cast %59 : vector<1x32x128xf32> to vector<32x128xf32>
    %cst_43 = arith.constant dense<0.000000e+00> : vector<16x128xf32>
    %61 = tpu.matmul %58, %60, %cst_43 {dimension_numbers = #tpu.dot_dimension_numbers<[1], [0], [0], [1], [0, 0, 1, 1], [], []>, precision = #tpu.contract_precision<fp32>} : vector<16x32xf32>, vector<32x128xf32>, vector<16x128xf32> -> vector<16x128xf32>
    %c4_44 = arith.constant 4 : index
    %c0_45 = arith.constant 0 : index
    %c0_46 = arith.constant 0 : index
    %62 = vector.load %arg3[%c4_44, %c0_45, %c0_46] : memref<5x16x128xf32, #tpu.memory_space<vmem>>, vector<1x16x128xf32>
    %63 = vector.shape_cast %62 : vector<1x16x128xf32> to vector<16x128xf32>
    %64 = vector.shape_cast %61 : vector<16x128xf32> to vector<1x16x128xf32>
    tpu.vector_store %arg3[%c4_44, %c0_45, %c0_46], %64 {strides = array<i32>} : memref<5x16x128xf32, #tpu.memory_space<vmem>>, vector<1x16x128xf32>,
    %cst_47 = arith.constant dense<0.000000e+00> : vector<16x16xf32>
    %65 = tpu.matmul %61, %61, %cst_47 {dimension_numbers = #tpu.dot_dimension_numbers<[1], [1], [0], [0], [0, 0, 1, 0], [], []>, precision = #tpu.contract_precision<fp32>} : vector<16x128xf32>, vector<16x128xf32>, vector<16x16xf32> -> vector<16x16xf32>
    %cst_48 = arith.constant 0.000000e+00 : f32
    %66 = vector.broadcast %cst_48 : f32 to vector<16x16xf32>
    %67 = arith.subf %66, %65 : vector<16x16xf32>
    %68 = math.exp %67 : vector<16x16xf32>
    %cst_49 = arith.constant 1.000000e+00 : f32
    %69 = vector.broadcast %cst_49 : f32 to vector<16x16xf32>
    %70 = arith.addf %69, %68 : vector<16x16xf32>
    %cst_50 = arith.constant 1.000000e+00 : f32
    %71 = vector.broadcast %cst_50 : f32 to vector<16x16xf32>
    %72 = arith.divf %71, %70 : vector<16x16xf32>
    %c0_51 = arith.constant 0 : index
    %c0_52 = arith.constant 0 : index
    %73 = vector.load %arg4[%c0_51, %c0_52] : memref<16x128xf32, #tpu.memory_space<vmem>>, vector<16x16xf32>
    tpu.vector_store %arg4[%c0_51, %c0_52], %72 {strides = array<i32>} : memref<16x128xf32, #tpu.memory_space<vmem>>, vector<16x16xf32>,
    return
  }
}

</mosaic_0001>

<llo_original>
// kernel: _gcn_forward_padded.1
$region0: #{_gcn_forward_padded.1}
  #allocation0 [shape = 'u32[]', space=smem, size = 0x4, offset = 0x4, fixed_abs, tag = 'smem constant byte address 0x4 - core index']
  #allocation1 [shape = 'u32[72,128]{1,0:T(1,128)}', space=vmem, size = 0x9000, scoped, tag = 'internal scratch']
  %s0 = inlined_call_operand.vmem [shape: f32[16,16], index: 0, kind: input, shape index: {}]
  %s1 = inlined_call_operand.vmem [shape: f32[16,128], index: 1, kind: input, shape index: {}]
  %s2 = inlined_call_operand.hbm [shape: f32[5,32,128], index: 2, kind: input, shape index: {}]
  %s3 = inlined_call_operand.vmem [shape: f32[5,16,128], index: 3, kind: output, shape index: {0}]
  %s4 = inlined_call_operand.hbm [shape: f32[16,128], index: 4, kind: output, shape index: {1}]
  %5 = xla_tuple %s3, %s4
  %s6 = sld [smem:[#allocation0]]
  $region34: #{_gcn_forward_padded.1} parent=0
    _
  %s8 = ssub.s32 1, %s6
  %s9 = scalar_select 0, %s8, %s6
  $region1: #{_gcn_forward_padded.1} parent=0
    #allocation2 [shape = 'u8[81920]{0}', space=vmem, size = 0x14000, scoped, tag = 'input window, operand 2, single buffered']
    #allocation3 [shape = 's32[1]{0}', space=sflag, size = 0x4, scoped, tag = 'scoped memory for _gcn_forward_padded.1']
    #allocation4 [shape = 's32[1]{0}', space=sflag, size = 0x4, scoped, tag = 'scoped memory for _gcn_forward_padded.1']
    #allocation5 [shape = 'u8[8192]{0}', space=vmem, size = 0x2000, scoped, tag = 'output window, operand 1, single buffered']
    %10 = vsyncpa [#allocation3], 0
    %11 = vsyncpa [#allocation4], 0
    // Predicated region
    $region2: #{_gcn_forward_padded.1} parent=1 // pred_check
      _
    $region3: #{_gcn_forward_padded.1} parent=1 // pred_check_branch
      %13 = sbr.rel (0) target = $region5
    $region4: #{_gcn_forward_padded.1} parent=1 // pred_region
      _
    $region5: #{_gcn_forward_padded.1} parent=1 // pred_fallthru
      _
    // Predicated region
    $region6: #{_gcn_forward_padded.1} parent=1 // pred_check
      _
    $region7: #{_gcn_forward_padded.1} parent=1 // pred_check_branch
      %15 = sbr.rel (0) target = $region9
    $region8: #{_gcn_forward_padded.1} parent=1 // pred_region
      _
    $region9: #{_gcn_forward_padded.1} parent=1 // pred_fallthru
      _
    // Predicated region
    $region10: #{_gcn_forward_padded.1} parent=1 // pred_check
      _
    $region11: #{_gcn_forward_padded.1} parent=1 // pred_check_branch
      %17 = sbr.rel (0) target = $region13
    $region12: #{_gcn_forward_padded.1} parent=1 // pred_region
      %19 = vsyncadd [#allocation3], 0
      %s20 = sshll.u32 %s2, 4
      %s21 = int_to_ptr.hbm [resolvable:$true] %s20
      %s22 = sshll.u32 [#allocation2], 4
      %s23 = int_to_ptr.vmem [resolvable:$true] %s22
      %28 = dma.hbm_to_vmem [thread:$0]  %s21, 2560, %s23, [#allocation3], 128, 128, 8
    $region13: #{_gcn_forward_padded.1} parent=1 // pred_fallthru
      _
    // Predicated region
    $region14: #{_gcn_forward_padded.1} parent=1 // pred_check
      _
    $region15: #{_gcn_forward_padded.1} parent=1 // pred_check_branch
      %30 = sbr.rel (0) target = $region17
    $region16: #{_gcn_forward_padded.1} parent=1 // pred_region
      %32 = dma.done [#allocation3], 2560
    $region17: #{_gcn_forward_padded.1} parent=1 // pred_fallthru
      _
    %v33 = vld [vmem:[%s0] sm:$0xff]
    %v34 = vld [vmem:[%s0 + $0x8] sm:$0xff]
    %v35 = vld [vmem:[%s1] sm:$0xff]
    %v36 = vld [vmem:[%s1 + $0x8] sm:$0xff]
    %vm37 = vcmask 130048
    %v39 = vsel %vm37, %v33, 0
    %v42 = vsel %vm37, %v34, 0
    %44 = vmatpush.msra.mxu0 0.0
    %45 = vmatpush.msra.mxu0 0.0
    %46 = vmatpush.msra.mxu0 0.0
    %47 = vmatpush.msra.mxu0 0.0
    %48 = vmatpush.msra.mxu0 0.0
    %49 = vmatpush.msra.mxu0 0.0
    %50 = vmatpush.msra.mxu0 0.0
    %51 = vmatpush.msra.mxu0 0.0
    %52 = vmatpush.msra.mxu0 0.0
    %53 = vmatpush.msra.mxu0 0.0
    %54 = vmatpush.msra.mxu0 0.0
    %55 = vmatpush.msra.mxu0 0.0
    %56 = vmatpush.msra.mxu0 0.0
    %57 = vmatpush.msra.mxu0 0.0
    %v58 = vand.u32 %v36, 4294901760
    %59 = vmatpush.msra.mxu0 %v58
    %v60 = vand.u32 %v35, 4294901760
    %61 = vmatpush.msra.mxu0 %v60
    %v62 = vand.u32 %v39, 4294901760
    %v63 = vsub.f32 %v39, %v62
    %v64 = vand.u32 %v63, 4294901760
    %v65 = vsub.f32 %v63, %v64
    %v66 = vand.u32 %v65, 4294901760
    %67 = vmatmul.f32.gmra.mxu0 %v66
    %v68 = vpop.f32.mrf.mxu0
    %v69 = vadd.f32 0.0, %v68
    %v70 = vand.u32 %v42, 4294901760
    %v71 = vsub.f32 %v42, %v70
    %v72 = vand.u32 %v71, 4294901760
    %v73 = vsub.f32 %v71, %v72
    %v74 = vand.u32 %v73, 4294901760
    %75 = vmatmul.f32.gmra.mxu0 %v74
    %v76 = vpop.f32.mrf.mxu0
    %v77 = vadd.f32 0.0, %v76
    %78 = vdwg.mxu0
    %79 = vmatpush.msra.mxu0 0.0
    %80 = vmatpush.msra.mxu0 0.0
    %81 = vmatpush.msra.mxu0 0.0
    %82 = vmatpush.msra.mxu0 0.0
    %83 = vmatpush.msra.mxu0 0.0
    %84 = vmatpush.msra.mxu0 0.0
    %85 = vmatpush.msra.mxu0 0.0
    %86 = vmatpush.msra.mxu0 0.0
    %87 = vmatpush.msra.mxu0 0.0
    %88 = vmatpush.msra.mxu0 0.0
    %89 = vmatpush.msra.mxu0 0.0
    %90 = vmatpush.msra.mxu0 0.0
    %91 = vmatpush.msra.mxu0 0.0
    %92 = vmatpush.msra.mxu0 0.0
    %v93 = vand.u32 %v36, 4294901760
    %v94 = vsub.f32 %v36, %v93
    %v95 = vand.u32 %v94, 4294901760
    %v96 = vsub.f32 %v94, %v95
    %v97 = vand.u32 %v96, 4294901760
    %98 = vmatpush.msra.mxu0 %v97
    %v99 = vand.u32 %v35, 4294901760
    %v100 = vsub.f32 %v35, %v99
    %v101 = vand.u32 %v100, 4294901760
    %v102 = vsub.f32 %v100, %v101
    %v103 = vand.u32 %v102, 4294901760
    %104 = vmatpush.msra.mxu0 %v103
    %v105 = vand.u32 %v39, 4294901760
    %106 = vmatmul.f32.gmra.mxu0 %v105
    %v107 = vpop.f32.mrf.mxu0
    %v108 = vadd.f32 %v69, %v107
    %v109 = vand.u32 %v42, 4294901760
    %110 = vmatmul.f32.gmra.mxu0 %v109
    %v111 = vpop.f32.mrf.mxu0
    %v112 = vadd.f32 %v77, %v111
    %113 = vdwg.mxu0
    %114 = vmatpush.msra.mxu0 0.0
    %115 = vmatpush.msra.mxu0 0.0
    %116 = vmatpush.msra.mxu0 0.0
    %117 = vmatpush.msra.mxu0 0.0
    %118 = vmatpush.msra.mxu0 0.0
    %119 = vmatpush.msra.mxu0 0.0
    %120 = vmatpush.msra.mxu0 0.0
    %121 = vmatpush.msra.mxu0 0.0
    %122 = vmatpush.msra.mxu0 0.0
    %123 = vmatpush.msra.mxu0 0.0
    %124 = vmatpush.msra.mxu0 0.0
    %125 = vmatpush.msra.mxu0 0.0
    %126 = vmatpush.msra.mxu0 0.0
    %127 = vmatpush.msra.mxu0 0.0
    %v128 = vand.u32 %v36, 4294901760
    %v129 = vsub.f32 %v36, %v128
    %130 = vmatpush.msra.mxu0 %v129
    %v131 = vand.u32 %v35, 4294901760
    %v132 = vsub.f32 %v35, %v131
    %133 = vmatpush.msra.mxu0 %v132
    %v134 = vand.u32 %v39, 4294901760
    %v135 = vsub.f32 %v39, %v134
    %136 = vmatmul.f32.gmra.mxu0 %v135
    %v137 = vpop.f32.mrf.mxu0
    %v138 = vadd.f32 %v108, %v137
    %v139 = vand.u32 %v42, 4294901760
    %v140 = vsub.f32 %v42, %v139
    %141 = vmatmul.f32.gmra.mxu0 %v140
    %v142 = vpop.f32.mrf.mxu0
    %v143 = vadd.f32 %v112, %v142
    %144 = vdwg.mxu0
    %145 = vmatpush.msra.mxu0 0.0
    %146 = vmatpush.msra.mxu0 0.0
    %147 = vmatpush.msra.mxu0 0.0
    %148 = vmatpush.msra.mxu0 0.0
    %149 = vmatpush.msra.mxu0 0.0
    %150 = vmatpush.msra.mxu0 0.0
    %151 = vmatpush.msra.mxu0 0.0
    %152 = vmatpush.msra.mxu0 0.0
    %153 = vmatpush.msra.mxu0 0.0
    %154 = vmatpush.msra.mxu0 0.0
    %155 = vmatpush.msra.mxu0 0.0
    %156 = vmatpush.msra.mxu0 0.0
    %157 = vmatpush.msra.mxu0 0.0
    %158 = vmatpush.msra.mxu0 0.0
    %v159 = vand.u32 %v36, 4294901760
    %160 = vmatpush.msra.mxu0 %v159
    %v161 = vand.u32 %v35, 4294901760
    %162 = vmatpush.msra.mxu0 %v161
    %v163 = vand.u32 %v39, 4294901760
    %v164 = vsub.f32 %v39, %v163
    %v165 = vand.u32 %v164, 4294901760
    %166 = vmatmul.f32.gmra.mxu0 %v165
    %v167 = vpop.f32.mrf.mxu0
    %v168 = vadd.f32 %v138, %v167
    %v169 = vand.u32 %v42, 4294901760
    %v170 = vsub.f32 %v42, %v169
    %v171 = vand.u32 %v170, 4294901760
    %172 = vmatmul.f32.gmra.mxu0 %v171
    %v173 = vpop.f32.mrf.mxu0
    %v174 = vadd.f32 %v143, %v173
    %175 = vdwg.mxu0
    %176 = vmatpush.msra.mxu0 0.0
    %177 = vmatpush.msra.mxu0 0.0
    %178 = vmatpush.msra.mxu0 0.0
    %179 = vmatpush.msra.mxu0 0.0
    %180 = vmatpush.msra.mxu0 0.0
    %181 = vmatpush.msra.mxu0 0.0
    %182 = vmatpush.msra.mxu0 0.0
    %183 = vmatpush.msra.mxu0 0.0
    %184 = vmatpush.msra.mxu0 0.0
    %185 = vmatpush.msra.mxu0 0.0
    %186 = vmatpush.msra.mxu0 0.0
    %187 = vmatpush.msra.mxu0 0.0
    %188 = vmatpush.msra.mxu0 0.0
    %189 = vmatpush.msra.mxu0 0.0
    %v190 = vand.u32 %v36, 4294901760
    %v191 = vsub.f32 %v36, %v190
    %v192 = vand.u32 %v191, 4294901760
    %193 = vmatpush.msra.mxu0 %v192
    %v194 = vand.u32 %v35, 4294901760
    %v195 = vsub.f32 %v35, %v194
    %v196 = vand.u32 %v195, 4294901760
    %197 = vmatpush.msra.mxu0 %v196
    %v198 = vand.u32 %v39, 4294901760
    %199 = vmatmul.f32.gmra.mxu0 %v198
    %v200 = vpop.f32.mrf.mxu0
    %v201 = vadd.f32 %v168, %v200
    %v202 = vand.u32 %v42, 4294901760
    %203 = vmatmul.f32.gmra.mxu0 %v202
    %v204 = vpop.f32.mrf.mxu0
    %v205 = vadd.f32 %v174, %v204
    %206 = vdwg.mxu0
    %207 = vmatpush.msra.mxu0 0.0
    %208 = vmatpush.msra.mxu0 0.0
    %209 = vmatpush.msra.mxu0 0.0
    %210 = vmatpush.msra.mxu0 0.0
    %211 = vmatpush.msra.mxu0 0.0
    %212 = vmatpush.msra.mxu0 0.0
    %213 = vmatpush.msra.mxu0 0.0
    %214 = vmatpush.msra.mxu0 0.0
    %215 = vmatpush.msra.mxu0 0.0
    %216 = vmatpush.msra.mxu0 0.0
    %217 = vmatpush.msra.mxu0 0.0
    %218 = vmatpush.msra.mxu0 0.0
    %219 = vmatpush.msra.mxu0 0.0
    %220 = vmatpush.msra.mxu0 0.0
    %v221 = vand.u32 %v36, 4294901760
    %222 = vmatpush.msra.mxu0 %v221
    %v223 = vand.u32 %v35, 4294901760
    %224 = vmatpush.msra.mxu0 %v223
    %v225 = vand.u32 %v39, 4294901760
    %226 = vmatmul.f32.gmra.mxu0 %v225
    %v227 = vpop.f32.mrf.mxu0
    %v228 = vadd.f32 %v201, %v227
    %v229 = vand.u32 %v42, 4294901760
    %230 = vmatmul.f32.gmra.mxu0 %v229
    %v231 = vpop.f32.mrf.mxu0
    %v232 = vadd.f32 %v205, %v231
    %233 = vdwg.mxu0
    %v234 = vld [vmem:[#allocation2] sm:$0xff]
    %v235 = vld [vmem:[#allocation2 + $0x8] sm:$0xff]
    %v236 = vld [vmem:[#allocation2 + $0x10] sm:$0xff]
    %v237 = vld [vmem:[#allocation2 + $0x18] sm:$0xff]
    %vm238 = vcmask 261120
    %v240 = vsel %vm238, %v228, 0
    %v243 = vsel %vm238, %v232, 0
    %245 = vmatpush.msra.mxu0 0.0
    %246 = vmatpush.msra.mxu0 0.0
    %247 = vmatpush.msra.mxu0 0.0
    %248 = vmatpush.msra.mxu0 0.0
    %249 = vmatpush.msra.mxu0 0.0
    %250 = vmatpush.msra.mxu0 0.0
    %251 = vmatpush.msra.mxu0 0.0
    %252 = vmatpush.msra.mxu0 0.0
    %253 = vmatpush.msra.mxu0 0.0
    %254 = vmatpush.msra.mxu0 0.0
    %255 = vmatpush.msra.mxu0 0.0
    %256 = vmatpush.msra.mxu0 0.0
    %v257 = vand.u32 %v237, 4294901760
    %258 = vmatpush.msra.mxu0 %v257
    %v259 = vand.u32 %v236, 4294901760
    %260 = vmatpush.msra.mxu0 %v259
    %v261 = vand.u32 %v235, 4294901760
    %262 = vmatpush.msra.mxu0 %v261
    %v263 = vand.u32 %v234, 4294901760
    %264 = vmatpush.msra.mxu0 %v263
    %v265 = vand.u32 %v240, 4294901760
    %v266 = vsub.f32 %v240, %v265
    %v267 = vand.u32 %v266, 4294901760
    %v268 = vsub.f32 %v266, %v267
    %v269 = vand.u32 %v268, 4294901760
    %270 = vmatmul.f32.gmra.mxu0 %v269
    %v271 = vpop.f32.mrf.mxu0
    %v272 = vadd.f32 0.0, %v271
    %v273 = vand.u32 %v243, 4294901760
    %v274 = vsub.f32 %v243, %v273
    %v275 = vand.u32 %v274, 4294901760
    %v276 = vsub.f32 %v274, %v275
    %v277 = vand.u32 %v276, 4294901760
    %278 = vmatmul.f32.gmra.mxu0 %v277
    %v279 = vpop.f32.mrf.mxu0
    %v280 = vadd.f32 0.0, %v279
    %281 = vdwg.mxu0
    %282 = vmatpush.msra.mxu0 0.0
    %283 = vmatpush.msra.mxu0 0.0
    %284 = vmatpush.msra.mxu0 0.0
    %285 = vmatpush.msra.mxu0 0.0
    %286 = vmatpush.msra.mxu0 0.0
    %287 = vmatpush.msra.mxu0 0.0
    %288 = vmatpush.msra.mxu0 0.0
    %289 = vmatpush.msra.mxu0 0.0
    %290 = vmatpush.msra.mxu0 0.0
    %291 = vmatpush.msra.mxu0 0.0
    %292 = vmatpush.msra.mxu0 0.0
    %293 = vmatpush.msra.mxu0 0.0
    %v294 = vand.u32 %v237, 4294901760
    %v295 = vsub.f32 %v237, %v294
    %v296 = vand.u32 %v295, 4294901760
    %v297 = vsub.f32 %v295, %v296
    %v298 = vand.u32 %v297, 4294901760
    %299 = vmatpush.msra.mxu0 %v298
    %v300 = vand.u32 %v236, 4294901760
    %v301 = vsub.f32 %v236, %v300
    %v302 = vand.u32 %v301, 4294901760
    %v303 = vsub.f32 %v301, %v302
    %v304 = vand.u32 %v303, 4294901760
    %305 = vmatpush.msra.mxu0 %v304
    %v306 = vand.u32 %v235, 4294901760
    %v307 = vsub.f32 %v235, %v306
    %v308 = vand.u32 %v307, 4294901760
    %v309 = vsub.f32 %v307, %v308
    %v310 = vand.u32 %v309, 4294901760
    %311 = vmatpush.msra.mxu0 %v310
    %v312 = vand.u32 %v234, 4294901760
    %v313 = vsub.f32 %v234, %v312
    %v314 = vand.u32 %v313, 4294901760
    %v315 = vsub.f32 %v313, %v314
    %v316 = vand.u32 %v315, 4294901760
    %317 = vmatpush.msra.mxu0 %v316
    %v318 = vand.u32 %v240, 4294901760
    %319 = vmatmul.f32.gmra.mxu0 %v318
    %v320 = vpop.f32.mrf.mxu0
    %v321 = vadd.f32 %v272, %v320
    %v322 = vand.u32 %v243, 4294901760
    %323 = vmatmul.f32.gmra.mxu0 %v322
    %v324 = vpop.f32.mrf.mxu0
    %v325 = vadd.f32 %v280, %v324
    %326 = vdwg.mxu0
    %327 = vmatpush.msra.mxu0 0.0
    %328 = vmatpush.msra.mxu0 0.0
    %329 = vmatpush.msra.mxu0 0.0
    %330 = vmatpush.msra.mxu0 0.0
    %331 = vmatpush.msra.mxu0 0.0
    %332 = vmatpush.msra.mxu0 0.0
    %333 = vmatpush.msra.mxu0 0.0
    %334 = vmatpush.msra.mxu0 0.0
    %335 = vmatpush.msra.mxu0 0.0
    %336 = vmatpush.msra.mxu0 0.0
    %337 = vmatpush.msra.mxu0 0.0
    %338 = vmatpush.msra.mxu0 0.0
    %v339 = vand.u32 %v237, 4294901760
    %v340 = vsub.f32 %v237, %v339
    %341 = vmatpush.msra.mxu0 %v340
    %v342 = vand.u32 %v236, 4294901760
    %v343 = vsub.f32 %v236, %v342
    %344 = vmatpush.msra.mxu0 %v343
    %v345 = vand.u32 %v235, 4294901760
    %v346 = vsub.f32 %v235, %v345
    %347 = vmatpush.msra.mxu0 %v346
    %v348 = vand.u32 %v234, 4294901760
    %v349 = vsub.f32 %v234, %v348
    %350 = vmatpush.msra.mxu0 %v349
    %v351 = vand.u32 %v240, 4294901760
    %v352 = vsub.f32 %v240, %v351
    %353 = vmatmul.f32.gmra.mxu0 %v352
    %v354 = vpop.f32.mrf.mxu0
    %v355 = vadd.f32 %v321, %v354
    %v356 = vand.u32 %v243, 4294901760
    %v357 = vsub.f32 %v243, %v356
    %358 = vmatmul.f32.gmra.mxu0 %v357
    %v359 = vpop.f32.mrf.mxu0
    %v360 = vadd.f32 %v325, %v359
    %361 = vdwg.mxu0
    %362 = vmatpush.msra.mxu0 0.0
    %363 = vmatpush.msra.mxu0 0.0
    %364 = vmatpush.msra.mxu0 0.0
    %365 = vmatpush.msra.mxu0 0.0
    %366 = vmatpush.msra.mxu0 0.0
    %367 = vmatpush.msra.mxu0 0.0
    %368 = vmatpush.msra.mxu0 0.0
    %369 = vmatpush.msra.mxu0 0.0
    %370 = vmatpush.msra.mxu0 0.0
    %371 = vmatpush.msra.mxu0 0.0
    %372 = vmatpush.msra.mxu0 0.0
    %373 = vmatpush.msra.mxu0 0.0
    %v374 = vand.u32 %v237, 4294901760
    %375 = vmatpush.msra.mxu0 %v374
    %v376 = vand.u32 %v236, 4294901760
    %377 = vmatpush.msra.mxu0 %v376
    %v378 = vand.u32 %v235, 4294901760
    %379 = vmatpush.msra.mxu0 %v378
    %v380 = vand.u32 %v234, 4294901760
    %381 = vmatpush.msra.mxu0 %v380
    %v382 = vand.u32 %v240, 4294901760
    %v383 = vsub.f32 %v240, %v382
    %v384 = vand.u32 %v383, 4294901760
    %385 = vmatmul.f32.gmra.mxu0 %v384
    %v386 = vpop.f32.mrf.mxu0
    %v387 = vadd.f32 %v355, %v386
    %v388 = vand.u32 %v243, 4294901760
    %v389 = vsub.f32 %v243, %v388
    %v390 = vand.u32 %v389, 4294901760
    %391 = vmatmul.f32.gmra.mxu0 %v390
    %v392 = vpop.f32.mrf.mxu0
    %v393 = vadd.f32 %v360, %v392
    %394 = vdwg.mxu0
    %395 = vmatpush.msra.mxu0 0.0
    %396 = vmatpush.msra.mxu0 0.0
    %397 = vmatpush.msra.mxu0 0.0
    %398 = vmatpush.msra.mxu0 0.0
    %399 = vmatpush.msra.mxu0 0.0
    %400 = vmatpush.msra.mxu0 0.0
    %401 = vmatpush.msra.mxu0 0.0
    %402 = vmatpush.msra.mxu0 0.0
    %403 = vmatpush.msra.mxu0 0.0
    %404 = vmatpush.msra.mxu0 0.0
    %405 = vmatpush.msra.mxu0 0.0
    %406 = vmatpush.msra.mxu0 0.0
    %v407 = vand.u32 %v237, 4294901760
    %v408 = vsub.f32 %v237, %v407
    %v409 = vand.u32 %v408, 4294901760
    %410 = vmatpush.msra.mxu0 %v409
    %v411 = vand.u32 %v236, 4294901760
    %v412 = vsub.f32 %v236, %v411
    %v413 = vand.u32 %v412, 4294901760
    %414 = vmatpush.msra.mxu0 %v413
    %v415 = vand.u32 %v235, 4294901760
    %v416 = vsub.f32 %v235, %v415
    %v417 = vand.u32 %v416, 4294901760
    %418 = vmatpush.msra.mxu0 %v417
    %v419 = vand.u32 %v234, 4294901760
    %v420 = vsub.f32 %v234, %v419
    %v421 = vand.u32 %v420, 4294901760
    %422 = vmatpush.msra.mxu0 %v421
    %v423 = vand.u32 %v240, 4294901760
    %424 = vmatmul.f32.gmra.mxu0 %v423
    %v425 = vpop.f32.mrf.mxu0
    %v426 = vadd.f32 %v387, %v425
    %v427 = vand.u32 %v243, 4294901760
    %428 = vmatmul.f32.gmra.mxu0 %v427
    %v429 = vpop.f32.mrf.mxu0
    %v430 = vadd.f32 %v393, %v429
    %431 = vdwg.mxu0
    %432 = vmatpush.msra.mxu0 0.0
    %433 = vmatpush.msra.mxu0 0.0
    %434 = vmatpush.msra.mxu0 0.0
    %435 = vmatpush.msra.mxu0 0.0
    %436 = vmatpush.msra.mxu0 0.0
    %437 = vmatpush.msra.mxu0 0.0
    %438 = vmatpush.msra.mxu0 0.0
    %439 = vmatpush.msra.mxu0 0.0
    %440 = vmatpush.msra.mxu0 0.0
    %441 = vmatpush.msra.mxu0 0.0
    %442 = vmatpush.msra.mxu0 0.0
    %443 = vmatpush.msra.mxu0 0.0
    %v444 = vand.u32 %v237, 4294901760
    %445 = vmatpush.msra.mxu0 %v444
    %v446 = vand.u32 %v236, 4294901760
    %447 = vmatpush.msra.mxu0 %v446
    %v448 = vand.u32 %v235, 4294901760
    %449 = vmatpush.msra.mxu0 %v448
    %v450 = vand.u32 %v234, 4294901760
    %451 = vmatpush.msra.mxu0 %v450
    %v452 = vand.u32 %v240, 4294901760
    %453 = vmatmul.f32.gmra.mxu0 %v452
    %v454 = vpop.f32.mrf.mxu0
    %v455 = vadd.f32 %v426, %v454
    %v456 = vand.u32 %v243, 4294901760
    %457 = vmatmul.f32.gmra.mxu0 %v456
    %v458 = vpop.f32.mrf.mxu0
    %v459 = vadd.f32 %v430, %v458
    %460 = vdwg.mxu0
    %vm461 = vcmp.gt.f32.partialorder %v455, 0.0
    %vm462 = vcmp.gt.f32.partialorder %v459, 0.0
    %v463 = vmul.f32 %v455, 0.01
    %v464 = vmul.f32 %v459, 0.01
    %v465 = vsel %vm461, %v455, %v463
    %v466 = vsel %vm462, %v459, %v464
    %467 = vst [vmem:[%s3] sm:$0xff] %v465
    %468 = vst [vmem:[%s3 + $0x8] sm:$0xff] %v466
    %469 = vmatpush.msra.mxu0 0.0
    %470 = vmatpush.msra.mxu0 0.0
    %471 = vmatpush.msra.mxu0 0.0
    %472 = vmatpush.msra.mxu0 0.0
    %473 = vmatpush.msra.mxu0 0.0
    %474 = vmatpush.msra.mxu0 0.0
    %475 = vmatpush.msra.mxu0 0.0
    %476 = vmatpush.msra.mxu0 0.0
    %477 = vmatpush.msra.mxu0 0.0
    %478 = vmatpush.msra.mxu0 0.0
    %479 = vmatpush.msra.mxu0 0.0
    %480 = vmatpush.msra.mxu0 0.0
    %481 = vmatpush.msra.mxu0 0.0
    %482 = vmatpush.msra.mxu0 0.0
    %v483 = vand.u32 %v466, 4294901760
    %484 = vmatpush.msra.mxu0 %v483
    %v485 = vand.u32 %v465, 4294901760
    %486 = vmatpush.msra.mxu0 %v485
    %v487 = vand.u32 %v39, 4294901760
    %v488 = vsub.f32 %v39, %v487
    %v489 = vand.u32 %v488, 4294901760
    %v490 = vsub.f32 %v488, %v489
    %v491 = vand.u32 %v490, 4294901760
    %492 = vmatmul.f32.gmra.mxu0 %v491
    %v493 = vpop.f32.mrf.mxu0
    %v494 = vadd.f32 0.0, %v493
    %v495 = vand.u32 %v42, 4294901760
    %v496 = vsub.f32 %v42, %v495
    %v497 = vand.u32 %v496, 4294901760
    %v498 = vsub.f32 %v496, %v497
    %v499 = vand.u32 %v498, 4294901760
    %500 = vmatmul.f32.gmra.mxu0 %v499
    %v501 = vpop.f32.mrf.mxu0
    %v502 = vadd.f32 0.0, %v501
    %503 = vdwg.mxu0
    %504 = vmatpush.msra.mxu0 0.0
    %505 = vmatpush.msra.mxu0 0.0
    %506 = vmatpush.msra.mxu0 0.0
    %507 = vmatpush.msra.mxu0 0.0
    %508 = vmatpush.msra.mxu0 0.0
    %509 = vmatpush.msra.mxu0 0.0
    %510 = vmatpush.msra.mxu0 0.0
    %511 = vmatpush.msra.mxu0 0.0
    %512 = vmatpush.msra.mxu0 0.0
    %513 = vmatpush.msra.mxu0 0.0
    %514 = vmatpush.msra.mxu0 0.0
    %515 = vmatpush.msra.mxu0 0.0
    %516 = vmatpush.msra.mxu0 0.0
    %517 = vmatpush.msra.mxu0 0.0
    %v518 = vand.u32 %v466, 4294901760
    %v519 = vsub.f32 %v466, %v518
    %v520 = vand.u32 %v519, 4294901760
    %v521 = vsub.f32 %v519, %v520
    %v522 = vand.u32 %v521, 4294901760
    %523 = vmatpush.msra.mxu0 %v522
    %v524 = vand.u32 %v465, 4294901760
    %v525 = vsub.f32 %v465, %v524
    %v526 = vand.u32 %v525, 4294901760
    %v527 = vsub.f32 %v525, %v526
    %v528 = vand.u32 %v527, 4294901760
    %529 = vmatpush.msra.mxu0 %v528
    %v530 = vand.u32 %v39, 4294901760
    %531 = vmatmul.f32.gmra.mxu0 %v530
    %v532 = vpop.f32.mrf.mxu0
    %v533 = vadd.f32 %v494, %v532
    %v534 = vand.u32 %v42, 4294901760
    %535 = vmatmul.f32.gmra.mxu0 %v534
    %v536 = vpop.f32.mrf.mxu0
    %v537 = vadd.f32 %v502, %v536
    %538 = vdwg.mxu0
    %539 = vmatpush.msra.mxu0 0.0
    %540 = vmatpush.msra.mxu0 0.0
    %541 = vmatpush.msra.mxu0 0.0
    %542 = vmatpush.msra.mxu0 0.0
    %543 = vmatpush.msra.mxu0 0.0
    %544 = vmatpush.msra.mxu0 0.0
    %545 = vmatpush.msra.mxu0 0.0
    %546 = vmatpush.msra.mxu0 0.0
    %547 = vmatpush.msra.mxu0 0.0
    %548 = vmatpush.msra.mxu0 0.0
    %549 = vmatpush.msra.mxu0 0.0
    %550 = vmatpush.msra.mxu0 0.0
    %551 = vmatpush.msra.mxu0 0.0
    %552 = vmatpush.msra.mxu0 0.0
    %v553 = vand.u32 %v466, 4294901760
    %v554 = vsub.f32 %v466, %v553
    %555 = vmatpush.msra.mxu0 %v554
    %v556 = vand.u32 %v465, 4294901760
    %v557 = vsub.f32 %v465, %v556
    %558 = vmatpush.msra.mxu0 %v557
    %v559 = vand.u32 %v39, 4294901760
    %v560 = vsub.f32 %v39, %v559
    %561 = vmatmul.f32.gmra.mxu0 %v560
    %v562 = vpop.f32.mrf.mxu0
    %v563 = vadd.f32 %v533, %v562
    %v564 = vand.u32 %v42, 4294901760
    %v565 = vsub.f32 %v42, %v564
    %566 = vmatmul.f32.gmra.mxu0 %v565
    %v567 = vpop.f32.mrf.mxu0
    %v568 = vadd.f32 %v537, %v567
    %569 = vdwg.mxu0
    %570 = vmatpush.msra.mxu0 0.0
    %571 = vmatpush.msra.mxu0 0.0
    %572 = vmatpush.msra.mxu0 0.0
    %573 = vmatpush.msra.mxu0 0.0
    %574 = vmatpush.msra.mxu0 0.0
    %575 = vmatpush.msra.mxu0 0.0
    %576 = vmatpush.msra.mxu0 0.0
    %577 = vmatpush.msra.mxu0 0.0
    %578 = vmatpush.msra.mxu0 0.0
    %579 = vmatpush.msra.mxu0 0.0
    %580 = vmatpush.msra.mxu0 0.0
    %581 = vmatpush.msra.mxu0 0.0
    %582 = vmatpush.msra.mxu0 0.0
    %583 = vmatpush.msra.mxu0 0.0
    %v584 = vand.u32 %v466, 4294901760
    %585 = vmatpush.msra.mxu0 %v584
    %v586 = vand.u32 %v465, 4294901760
    %587 = vmatpush.msra.mxu0 %v586
    %v588 = vand.u32 %v39, 4294901760
    %v589 = vsub.f32 %v39, %v588
    %v590 = vand.u32 %v589, 4294901760
    %591 = vmatmul.f32.gmra.mxu0 %v590
    %v592 = vpop.f32.mrf.mxu0
    %v593 = vadd.f32 %v563, %v592
    %v594 = vand.u32 %v42, 4294901760
    %v595 = vsub.f32 %v42, %v594
    %v596 = vand.u32 %v595, 4294901760
    %597 = vmatmul.f32.gmra.mxu0 %v596
    %v598 = vpop.f32.mrf.mxu0
    %v599 = vadd.f32 %v568, %v598
    %600 = vdwg.mxu0
    %601 = vmatpush.msra.mxu0 0.0
    %602 = vmatpush.msra.mxu0 0.0
    %603 = vmatpush.msra.mxu0 0.0
    %604 = vmatpush.msra.mxu0 0.0
    %605 = vmatpush.msra.mxu0 0.0
    %606 = vmatpush.msra.mxu0 0.0
    %607 = vmatpush.msra.mxu0 0.0
    %608 = vmatpush.msra.mxu0 0.0
    %609 = vmatpush.msra.mxu0 0.0
    %610 = vmatpush.msra.mxu0 0.0
    %611 = vmatpush.msra.mxu0 0.0
    %612 = vmatpush.msra.mxu0 0.0
    %613 = vmatpush.msra.mxu0 0.0
    %614 = vmatpush.msra.mxu0 0.0
    %v615 = vand.u32 %v466, 4294901760
    %v616 = vsub.f32 %v466, %v615
    %v617 = vand.u32 %v616, 4294901760
    %618 = vmatpush.msra.mxu0 %v617
    %v619 = vand.u32 %v465, 4294901760
    %v620 = vsub.f32 %v465, %v619
    %v621 = vand.u32 %v620, 4294901760
    %622 = vmatpush.msra.mxu0 %v621
    %v623 = vand.u32 %v39, 4294901760
    %624 = vmatmul.f32.gmra.mxu0 %v623
    %v625 = vpop.f32.mrf.mxu0
    %v626 = vadd.f32 %v593, %v625
    %v627 = vand.u32 %v42, 4294901760
    %628 = vmatmul.f32.gmra.mxu0 %v627
    %v629 = vpop.f32.mrf.mxu0
    %v630 = vadd.f32 %v599, %v629
    %631 = vdwg.mxu0
    %632 = vmatpush.msra.mxu0 0.0
    %633 = vmatpush.msra.mxu0 0.0
    %634 = vmatpush.msra.mxu0 0.0
    %635 = vmatpush.msra.mxu0 0.0
    %636 = vmatpush.msra.mxu0 0.0
    %637 = vmatpush.msra.mxu0 0.0
    %638 = vmatpush.msra.mxu0 0.0
    %639 = vmatpush.msra.mxu0 0.0
    %640 = vmatpush.msra.mxu0 0.0
    %641 = vmatpush.msra.mxu0 0.0
    %642 = vmatpush.msra.mxu0 0.0
    %643 = vmatpush.msra.mxu0 0.0
    %644 = vmatpush.msra.mxu0 0.0
    %645 = vmatpush.msra.mxu0 0.0
    %v646 = vand.u32 %v466, 4294901760
    %647 = vmatpush.msra.mxu0 %v646
    %v648 = vand.u32 %v465, 4294901760
    %649 = vmatpush.msra.mxu0 %v648
    %v650 = vand.u32 %v39, 4294901760
    %651 = vmatmul.f32.gmra.mxu0 %v650
    %v652 = vpop.f32.mrf.mxu0
    %v653 = vadd.f32 %v626, %v652
    %v654 = vand.u32 %v42, 4294901760
    %655 = vmatmul.f32.gmra.mxu0 %v654
    %v656 = vpop.f32.mrf.mxu0
    %v657 = vadd.f32 %v630, %v656
    %658 = vdwg.mxu0
    %s659 = scalar_lea.vmem [#allocation2], 32
    %v660 = vld [vmem:[%s659] sm:$0xff]
    %v661 = vld [vmem:[%s659 + $0x8] sm:$0xff]
    %v662 = vld [vmem:[%s659 + $0x10] sm:$0xff]
    %v663 = vld [vmem:[%s659 + $0x18] sm:$0xff]
    %v665 = vsel %vm238, %v653, 0
    %v668 = vsel %vm238, %v657, 0
    %670 = vmatpush.msra.mxu0 0.0
    %671 = vmatpush.msra.mxu0 0.0
    %672 = vmatpush.msra.mxu0 0.0
    %673 = vmatpush.msra.mxu0 0.0
    %674 = vmatpush.msra.mxu0 0.0
    %675 = vmatpush.msra.mxu0 0.0
    %676 = vmatpush.msra.mxu0 0.0
    %677 = vmatpush.msra.mxu0 0.0
    %678 = vmatpush.msra.mxu0 0.0
    %679 = vmatpush.msra.mxu0 0.0
    %680 = vmatpush.msra.mxu0 0.0
    %681 = vmatpush.msra.mxu0 0.0
    %v682 = vand.u32 %v663, 4294901760
    %683 = vmatpush.msra.mxu0 %v682
    %v684 = vand.u32 %v662, 4294901760
    %685 = vmatpush.msra.mxu0 %v684
    %v686 = vand.u32 %v661, 4294901760
    %687 = vmatpush.msra.mxu0 %v686
    %v688 = vand.u32 %v660, 4294901760
    %689 = vmatpush.msra.mxu0 %v688
    %v690 = vand.u32 %v665, 4294901760
    %v691 = vsub.f32 %v665, %v690
    %v692 = vand.u32 %v691, 4294901760
    %v693 = vsub.f32 %v691, %v692
    %v694 = vand.u32 %v693, 4294901760
    %695 = vmatmul.f32.gmra.mxu0 %v694
    %v696 = vpop.f32.mrf.mxu0
    %v697 = vadd.f32 0.0, %v696
    %v698 = vand.u32 %v668, 4294901760
    %v699 = vsub.f32 %v668, %v698
    %v700 = vand.u32 %v699, 4294901760
    %v701 = vsub.f32 %v699, %v700
    %v702 = vand.u32 %v701, 4294901760
    %703 = vmatmul.f32.gmra.mxu0 %v702
    %v704 = vpop.f32.mrf.mxu0
    %v705 = vadd.f32 0.0, %v704
    %706 = vdwg.mxu0
    %707 = vmatpush.msra.mxu0 0.0
    %708 = vmatpush.msra.mxu0 0.0
    %709 = vmatpush.msra.mxu0 0.0
    %710 = vmatpush.msra.mxu0 0.0
    %711 = vmatpush.msra.mxu0 0.0
    %712 = vmatpush.msra.mxu0 0.0
    %713 = vmatpush.msra.mxu0 0.0
    %714 = vmatpush.msra.mxu0 0.0
    %715 = vmatpush.msra.mxu0 0.0
    %716 = vmatpush.msra.mxu0 0.0
    %717 = vmatpush.msra.mxu0 0.0
    %718 = vmatpush.msra.mxu0 0.0
    %v719 = vand.u32 %v663, 4294901760
    %v720 = vsub.f32 %v663, %v719
    %v721 = vand.u32 %v720, 4294901760
    %v722 = vsub.f32 %v720, %v721
    %v723 = vand.u32 %v722, 4294901760
    %724 = vmatpush.msra.mxu0 %v723
    %v725 = vand.u32 %v662, 4294901760
    %v726 = vsub.f32 %v662, %v725
    %v727 = vand.u32 %v726, 4294901760
    %v728 = vsub.f32 %v726, %v727
    %v729 = vand.u32 %v728, 4294901760
    %730 = vmatpush.msra.mxu0 %v729
    %v731 = vand.u32 %v661, 4294901760
    %v732 = vsub.f32 %v661, %v731
    %v733 = vand.u32 %v732, 4294901760
    %v734 = vsub.f32 %v732, %v733
    %v735 = vand.u32 %v734, 4294901760
    %736 = vmatpush.msra.mxu0 %v735
    %v737 = vand.u32 %v660, 4294901760
    %v738 = vsub.f32 %v660, %v737
    %v739 = vand.u32 %v738, 4294901760
    %v740 = vsub.f32 %v738, %v739
    %v741 = vand.u32 %v740, 4294901760
    %742 = vmatpush.msra.mxu0 %v741
    %v743 = vand.u32 %v665, 4294901760
    %744 = vmatmul.f32.gmra.mxu0 %v743
    %v745 = vpop.f32.mrf.mxu0
    %v746 = vadd.f32 %v697, %v745
    %v747 = vand.u32 %v668, 4294901760
    %748 = vmatmul.f32.gmra.mxu0 %v747
    %v749 = vpop.f32.mrf.mxu0
    %v750 = vadd.f32 %v705, %v749
    %751 = vdwg.mxu0
    %752 = vmatpush.msra.mxu0 0.0
    %753 = vmatpush.msra.mxu0 0.0
    %754 = vmatpush.msra.mxu0 0.0
    %755 = vmatpush.msra.mxu0 0.0
    %756 = vmatpush.msra.mxu0 0.0
    %757 = vmatpush.msra.mxu0 0.0
    %758 = vmatpush.msra.mxu0 0.0
    %759 = vmatpush.msra.mxu0 0.0
    %760 = vmatpush.msra.mxu0 0.0
    %761 = vmatpush.msra.mxu0 0.0
    %762 = vmatpush.msra.mxu0 0.0
    %763 = vmatpush.msra.mxu0 0.0
    %v764 = vand.u32 %v663, 4294901760
    %v765 = vsub.f32 %v663, %v764
    %766 = vmatpush.msra.mxu0 %v765
    %v767 = vand.u32 %v662, 4294901760
    %v768 = vsub.f32 %v662, %v767
    %769 = vmatpush.msra.mxu0 %v768
    %v770 = vand.u32 %v661, 4294901760
    %v771 = vsub.f32 %v661, %v770
    %772 = vmatpush.msra.mxu0 %v771
    %v773 = vand.u32 %v660, 4294901760
    %v774 = vsub.f32 %v660, %v773
    %775 = vmatpush.msra.mxu0 %v774
    %v776 = vand.u32 %v665, 4294901760
    %v777 = vsub.f32 %v665, %v776
    %778 = vmatmul.f32.gmra.mxu0 %v777
    %v779 = vpop.f32.mrf.mxu0
    %v780 = vadd.f32 %v746, %v779
    %v781 = vand.u32 %v668, 4294901760
    %v782 = vsub.f32 %v668, %v781
    %783 = vmatmul.f32.gmra.mxu0 %v782
    %v784 = vpop.f32.mrf.mxu0
    %v785 = vadd.f32 %v750, %v784
    %786 = vdwg.mxu0
    %787 = vmatpush.msra.mxu0 0.0
    %788 = vmatpush.msra.mxu0 0.0
    %789 = vmatpush.msra.mxu0 0.0
    %790 = vmatpush.msra.mxu0 0.0
    %791 = vmatpush.msra.mxu0 0.0
    %792 = vmatpush.msra.mxu0 0.0
    %793 = vmatpush.msra.mxu0 0.0
    %794 = vmatpush.msra.mxu0 0.0
    %795 = vmatpush.msra.mxu0 0.0
    %796 = vmatpush.msra.mxu0 0.0
    %797 = vmatpush.msra.mxu0 0.0
    %798 = vmatpush.msra.mxu0 0.0
    %v799 = vand.u32 %v663, 4294901760
    %800 = vmatpush.msra.mxu0 %v799
    %v801 = vand.u32 %v662, 4294901760
    %802 = vmatpush.msra.mxu0 %v801
    %v803 = vand.u32 %v661, 4294901760
    %804 = vmatpush.msra.mxu0 %v803
    %v805 = vand.u32 %v660, 4294901760
    %806 = vmatpush.msra.mxu0 %v805
    %v807 = vand.u32 %v665, 4294901760
    %v808 = vsub.f32 %v665, %v807
    %v809 = vand.u32 %v808, 4294901760
    %810 = vmatmul.f32.gmra.mxu0 %v809
    %v811 = vpop.f32.mrf.mxu0
    %v812 = vadd.f32 %v780, %v811
    %v813 = vand.u32 %v668, 4294901760
    %v814 = vsub.f32 %v668, %v813
    %v815 = vand.u32 %v814, 4294901760
    %816 = vmatmul.f32.gmra.mxu0 %v815
    %v817 = vpop.f32.mrf.mxu0
    %v818 = vadd.f32 %v785, %v817
    %819 = vdwg.mxu0
    %820 = vmatpush.msra.mxu0 0.0
    %821 = vmatpush.msra.mxu0 0.0
    %822 = vmatpush.msra.mxu0 0.0
    %823 = vmatpush.msra.mxu0 0.0
    %824 = vmatpush.msra.mxu0 0.0
    %825 = vmatpush.msra.mxu0 0.0
    %826 = vmatpush.msra.mxu0 0.0
    %827 = vmatpush.msra.mxu0 0.0
    %828 = vmatpush.msra.mxu0 0.0
    %829 = vmatpush.msra.mxu0 0.0
    %830 = vmatpush.msra.mxu0 0.0
    %831 = vmatpush.msra.mxu0 0.0
    %v832 = vand.u32 %v663, 4294901760
    %v833 = vsub.f32 %v663, %v832
    %v834 = vand.u32 %v833, 4294901760
    %835 = vmatpush.msra.mxu0 %v834
    %v836 = vand.u32 %v662, 4294901760
    %v837 = vsub.f32 %v662, %v836
    %v838 = vand.u32 %v837, 4294901760
    %839 = vmatpush.msra.mxu0 %v838
    %v840 = vand.u32 %v661, 4294901760
    %v841 = vsub.f32 %v661, %v840
    %v842 = vand.u32 %v841, 4294901760
    %843 = vmatpush.msra.mxu0 %v842
    %v844 = vand.u32 %v660, 4294901760
    %v845 = vsub.f32 %v660, %v844
    %v846 = vand.u32 %v845, 4294901760
    %847 = vmatpush.msra.mxu0 %v846
    %v848 = vand.u32 %v665, 4294901760
    %849 = vmatmul.f32.gmra.mxu0 %v848
    %v850 = vpop.f32.mrf.mxu0
    %v851 = vadd.f32 %v812, %v850
    %v852 = vand.u32 %v668, 4294901760
    %853 = vmatmul.f32.gmra.mxu0 %v852
    %v854 = vpop.f32.mrf.mxu0
    %v855 = vadd.f32 %v818, %v854
    %856 = vdwg.mxu0
    %857 = vmatpush.msra.mxu0 0.0
    %858 = vmatpush.msra.mxu0 0.0
    %859 = vmatpush.msra.mxu0 0.0
    %860 = vmatpush.msra.mxu0 0.0
    %861 = vmatpush.msra.mxu0 0.0
    %862 = vmatpush.msra.mxu0 0.0
    %863 = vmatpush.msra.mxu0 0.0
    %864 = vmatpush.msra.mxu0 0.0
    %865 = vmatpush.msra.mxu0 0.0
    %866 = vmatpush.msra.mxu0 0.0
    %867 = vmatpush.msra.mxu0 0.0
    %868 = vmatpush.msra.mxu0 0.0
    %v869 = vand.u32 %v663, 4294901760
    %870 = vmatpush.msra.mxu0 %v869
    %v871 = vand.u32 %v662, 4294901760
    %872 = vmatpush.msra.mxu0 %v871
    %v873 = vand.u32 %v661, 4294901760
    %874 = vmatpush.msra.mxu0 %v873
    %v875 = vand.u32 %v660, 4294901760
    %876 = vmatpush.msra.mxu0 %v875
    %v877 = vand.u32 %v665, 4294901760
    %878 = vmatmul.f32.gmra.mxu0 %v877
    %v879 = vpop.f32.mrf.mxu0
    %v880 = vadd.f32 %v851, %v879
    %v881 = vand.u32 %v668, 4294901760
    %882 = vmatmul.f32.gmra.mxu0 %v881
    %v883 = vpop.f32.mrf.mxu0
    %v884 = vadd.f32 %v855, %v883
    %885 = vdwg.mxu0
    %vm886 = vcmp.gt.f32.partialorder %v880, 0.0
    %vm887 = vcmp.gt.f32.partialorder %v884, 0.0
    %v888 = vmul.f32 %v880, 1.442695
    %v889 = vpow.pop %v888
    %v890 = vmul.f32 %v884, 1.442695
    %v891 = vpow.pop %v890
    %v892 = vsub.f32 %v889, 1.0
    %v893 = vsub.f32 %v891, 1.0
    %v894 = vsel %vm886, %v880, %v892
    %v895 = vsel %vm887, %v884, %v893
    %s896 = scalar_lea.vmem %s3, 16
    %897 = vst [vmem:[%s896] sm:$0xff] %v894
    %898 = vst [vmem:[%s896 + $0x8] sm:$0xff] %v895
    %899 = vmatpush.msra.mxu0 0.0
    %900 = vmatpush.msra.mxu0 0.0
    %901 = vmatpush.msra.mxu0 0.0
    %902 = vmatpush.msra.mxu0 0.0
    %903 = vmatpush.msra.mxu0 0.0
    %904 = vmatpush.msra.mxu0 0.0
    %905 = vmatpush.msra.mxu0 0.0
    %906 = vmatpush.msra.mxu0 0.0
    %907 = vmatpush.msra.mxu0 0.0
    %908 = vmatpush.msra.mxu0 0.0
    %909 = vmatpush.msra.mxu0 0.0
    %910 = vmatpush.msra.mxu0 0.0
    %911 = vmatpush.msra.mxu0 0.0
    %912 = vmatpush.msra.mxu0 0.0
    %v913 = vand.u32 %v895, 4294901760
    %914 = vmatpush.msra.mxu0 %v913
    %v915 = vand.u32 %v894, 4294901760
    %916 = vmatpush.msra.mxu0 %v915
    %v917 = vand.u32 %v39, 4294901760
    %v918 = vsub.f32 %v39, %v917
    %v919 = vand.u32 %v918, 4294901760
    %v920 = vsub.f32 %v918, %v919
    %v921 = vand.u32 %v920, 4294901760
    %922 = vmatmul.f32.gmra.mxu0 %v921
    %v923 = vpop.f32.mrf.mxu0
    %v924 = vadd.f32 0.0, %v923
    %v925 = vand.u32 %v42, 4294901760
    %v926 = vsub.f32 %v42, %v925
    %v927 = vand.u32 %v926, 4294901760
    %v928 = vsub.f32 %v926, %v927
    %v929 = vand.u32 %v928, 4294901760
    %930 = vmatmul.f32.gmra.mxu0 %v929
    %v931 = vpop.f32.mrf.mxu0
    %v932 = vadd.f32 0.0, %v931
    %933 = vdwg.mxu0
    %934 = vmatpush.msra.mxu0 0.0
    %935 = vmatpush.msra.mxu0 0.0
    %936 = vmatpush.msra.mxu0 0.0
    %937 = vmatpush.msra.mxu0 0.0
    %938 = vmatpush.msra.mxu0 0.0
    %939 = vmatpush.msra.mxu0 0.0
    %940 = vmatpush.msra.mxu0 0.0
    %941 = vmatpush.msra.mxu0 0.0
    %942 = vmatpush.msra.mxu0 0.0
    %943 = vmatpush.msra.mxu0 0.0
    %944 = vmatpush.msra.mxu0 0.0
    %945 = vmatpush.msra.mxu0 0.0
    %946 = vmatpush.msra.mxu0 0.0
    %947 = vmatpush.msra.mxu0 0.0
    %v948 = vand.u32 %v895, 4294901760
    %v949 = vsub.f32 %v895, %v948
    %v950 = vand.u32 %v949, 4294901760
    %v951 = vsub.f32 %v949, %v950
    %v952 = vand.u32 %v951, 4294901760
    %953 = vmatpush.msra.mxu0 %v952
    %v954 = vand.u32 %v894, 4294901760
    %v955 = vsub.f32 %v894, %v954
    %v956 = vand.u32 %v955, 4294901760
    %v957 = vsub.f32 %v955, %v956
    %v958 = vand.u32 %v957, 4294901760
    %959 = vmatpush.msra.mxu0 %v958
    %v960 = vand.u32 %v39, 4294901760
    %961 = vmatmul.f32.gmra.mxu0 %v960
    %v962 = vpop.f32.mrf.mxu0
    %v963 = vadd.f32 %v924, %v962
    %v964 = vand.u32 %v42, 4294901760
    %965 = vmatmul.f32.gmra.mxu0 %v964
    %v966 = vpop.f32.mrf.mxu0
    %v967 = vadd.f32 %v932, %v966
    %968 = vdwg.mxu0
    %969 = vmatpush.msra.mxu0 0.0
    %970 = vmatpush.msra.mxu0 0.0
    %971 = vmatpush.msra.mxu0 0.0
    %972 = vmatpush.msra.mxu0 0.0
    %973 = vmatpush.msra.mxu0 0.0
    %974 = vmatpush.msra.mxu0 0.0
    %975 = vmatpush.msra.mxu0 0.0
    %976 = vmatpush.msra.mxu0 0.0
    %977 = vmatpush.msra.mxu0 0.0
    %978 = vmatpush.msra.mxu0 0.0
    %979 = vmatpush.msra.mxu0 0.0
    %980 = vmatpush.msra.mxu0 0.0
    %981 = vmatpush.msra.mxu0 0.0
    %982 = vmatpush.msra.mxu0 0.0
    %v983 = vand.u32 %v895, 4294901760
    %v984 = vsub.f32 %v895, %v983
    %985 = vmatpush.msra.mxu0 %v984
    %v986 = vand.u32 %v894, 4294901760
    %v987 = vsub.f32 %v894, %v986
    %988 = vmatpush.msra.mxu0 %v987
    %v989 = vand.u32 %v39, 4294901760
    %v990 = vsub.f32 %v39, %v989
    %991 = vmatmul.f32.gmra.mxu0 %v990
    %v992 = vpop.f32.mrf.mxu0
    %v993 = vadd.f32 %v963, %v992
    %v994 = vand.u32 %v42, 4294901760
    %v995 = vsub.f32 %v42, %v994
    %996 = vmatmul.f32.gmra.mxu0 %v995
    %v997 = vpop.f32.mrf.mxu0
    %v998 = vadd.f32 %v967, %v997
    %999 = vdwg.mxu0
    %1000 = vmatpush.msra.mxu0 0.0
    %1001 = vmatpush.msra.mxu0 0.0
    %1002 = vmatpush.msra.mxu0 0.0
    %1003 = vmatpush.msra.mxu0 0.0
    %1004 = vmatpush.msra.mxu0 0.0
    %1005 = vmatpush.msra.mxu0 0.0
    %1006 = vmatpush.msra.mxu0 0.0
    %1007 = vmatpush.msra.mxu0 0.0
    %1008 = vmatpush.msra.mxu0 0.0
    %1009 = vmatpush.msra.mxu0 0.0
    %1010 = vmatpush.msra.mxu0 0.0
    %1011 = vmatpush.msra.mxu0 0.0
    %1012 = vmatpush.msra.mxu0 0.0
    %1013 = vmatpush.msra.mxu0 0.0
    %v1014 = vand.u32 %v895, 4294901760
    %1015 = vmatpush.msra.mxu0 %v1014
    %v1016 = vand.u32 %v894, 4294901760
    %1017 = vmatpush.msra.mxu0 %v1016
    %v1018 = vand.u32 %v39, 4294901760
    %v1019 = vsub.f32 %v39, %v1018
    %v1020 = vand.u32 %v1019, 4294901760
    %1021 = vmatmul.f32.gmra.mxu0 %v1020
    %v1022 = vpop.f32.mrf.mxu0
    %v1023 = vadd.f32 %v993, %v1022
    %v1024 = vand.u32 %v42, 4294901760
    %v1025 = vsub.f32 %v42, %v1024
    %v1026 = vand.u32 %v1025, 4294901760
    %1027 = vmatmul.f32.gmra.mxu0 %v1026
    %v1028 = vpop.f32.mrf.mxu0
    %v1029 = vadd.f32 %v998, %v1028
    %1030 = vdwg.mxu0
    %1031 = vmatpush.msra.mxu0 0.0
    %1032 = vmatpush.msra.mxu0 0.0
    %1033 = vmatpush.msra.mxu0 0.0
    %1034 = vmatpush.msra.mxu0 0.0
    %1035 = vmatpush.msra.mxu0 0.0
    %1036 = vmatpush.msra.mxu0 0.0
    %1037 = vmatpush.msra.mxu0 0.0
    %1038 = vmatpush.msra.mxu0 0.0
    %1039 = vmatpush.msra.mxu0 0.0
    %1040 = vmatpush.msra.mxu0 0.0
    %1041 = vmatpush.msra.mxu0 0.0
    %1042 = vmatpush.msra.mxu0 0.0
    %1043 = vmatpush.msra.mxu0 0.0
    %1044 = vmatpush.msra.mxu0 0.0
    %v1045 = vand.u32 %v895, 4294901760
    %v1046 = vsub.f32 %v895, %v1045
    %v1047 = vand.u32 %v1046, 4294901760
    %1048 = vmatpush.msra.mxu0 %v1047
    %v1049 = vand.u32 %v894, 4294901760
    %v1050 = vsub.f32 %v894, %v1049
    %v1051 = vand.u32 %v1050, 4294901760
    %1052 = vmatpush.msra.mxu0 %v1051
    %v1053 = vand.u32 %v39, 4294901760
    %1054 = vmatmul.f32.gmra.mxu0 %v1053
    %v1055 = vpop.f32.mrf.mxu0
    %v1056 = vadd.f32 %v1023, %v1055
    %v1057 = vand.u32 %v42, 4294901760
    %1058 = vmatmul.f32.gmra.mxu0 %v1057
    %v1059 = vpop.f32.mrf.mxu0
    %v1060 = vadd.f32 %v1029, %v1059
    %1061 = vdwg.mxu0
    %1062 = vmatpush.msra.mxu0 0.0
    %1063 = vmatpush.msra.mxu0 0.0
    %1064 = vmatpush.msra.mxu0 0.0
    %1065 = vmatpush.msra.mxu0 0.0
    %1066 = vmatpush.msra.mxu0 0.0
    %1067 = vmatpush.msra.mxu0 0.0
    %1068 = vmatpush.msra.mxu0 0.0
    %1069 = vmatpush.msra.mxu0 0.0
    %1070 = vmatpush.msra.mxu0 0.0
    %1071 = vmatpush.msra.mxu0 0.0
    %1072 = vmatpush.msra.mxu0 0.0
    %1073 = vmatpush.msra.mxu0 0.0
    %1074 = vmatpush.msra.mxu0 0.0
    %1075 = vmatpush.msra.mxu0 0.0
    %v1076 = vand.u32 %v895, 4294901760
    %1077 = vmatpush.msra.mxu0 %v1076
    %v1078 = vand.u32 %v894, 4294901760
    %1079 = vmatpush.msra.mxu0 %v1078
    %v1080 = vand.u32 %v39, 4294901760
    %1081 = vmatmul.f32.gmra.mxu0 %v1080
    %v1082 = vpop.f32.mrf.mxu0
    %v1083 = vadd.f32 %v1056, %v1082
    %v1084 = vand.u32 %v42, 4294901760
    %1085 = vmatmul.f32.gmra.mxu0 %v1084
    %v1086 = vpop.f32.mrf.mxu0
    %v1087 = vadd.f32 %v1060, %v1086
    %1088 = vdwg.mxu0
    %s1089 = scalar_lea.vmem [#allocation2], 64
    %v1090 = vld [vmem:[%s1089] sm:$0xff]
    %v1091 = vld [vmem:[%s1089 + $0x8] sm:$0xff]
    %v1092 = vld [vmem:[%s1089 + $0x10] sm:$0xff]
    %v1093 = vld [vmem:[%s1089 + $0x18] sm:$0xff]
    %v1095 = vsel %vm238, %v1083, 0
    %v1098 = vsel %vm238, %v1087, 0
    %1100 = vmatpush.msra.mxu0 0.0
    %1101 = vmatpush.msra.mxu0 0.0
    %1102 = vmatpush.msra.mxu0 0.0
    %1103 = vmatpush.msra.mxu0 0.0
    %1104 = vmatpush.msra.mxu0 0.0
    %1105 = vmatpush.msra.mxu0 0.0
    %1106 = vmatpush.msra.mxu0 0.0
    %1107 = vmatpush.msra.mxu0 0.0
    %1108 = vmatpush.msra.mxu0 0.0
    %1109 = vmatpush.msra.mxu0 0.0
    %1110 = vmatpush.msra.mxu0 0.0
    %1111 = vmatpush.msra.mxu0 0.0
    %v1112 = vand.u32 %v1093, 4294901760
    %1113 = vmatpush.msra.mxu0 %v1112
    %v1114 = vand.u32 %v1092, 4294901760
    %1115 = vmatpush.msra.mxu0 %v1114
    %v1116 = vand.u32 %v1091, 4294901760
    %1117 = vmatpush.msra.mxu0 %v1116
    %v1118 = vand.u32 %v1090, 4294901760
    %1119 = vmatpush.msra.mxu0 %v1118
    %v1120 = vand.u32 %v1095, 4294901760
    %v1121 = vsub.f32 %v1095, %v1120
    %v1122 = vand.u32 %v1121, 4294901760
    %v1123 = vsub.f32 %v1121, %v1122
    %v1124 = vand.u32 %v1123, 4294901760
    %1125 = vmatmul.f32.gmra.mxu0 %v1124
    %v1126 = vpop.f32.mrf.mxu0
    %v1127 = vadd.f32 0.0, %v1126
    %v1128 = vand.u32 %v1098, 4294901760
    %v1129 = vsub.f32 %v1098, %v1128
    %v1130 = vand.u32 %v1129, 4294901760
    %v1131 = vsub.f32 %v1129, %v1130
    %v1132 = vand.u32 %v1131, 4294901760
    %1133 = vmatmul.f32.gmra.mxu0 %v1132
    %v1134 = vpop.f32.mrf.mxu0
    %v1135 = vadd.f32 0.0, %v1134
    %1136 = vdwg.mxu0
    %1137 = vmatpush.msra.mxu0 0.0
    %1138 = vmatpush.msra.mxu0 0.0
    %1139 = vmatpush.msra.mxu0 0.0
    %1140 = vmatpush.msra.mxu0 0.0
    %1141 = vmatpush.msra.mxu0 0.0
    %1142 = vmatpush.msra.mxu0 0.0
    %1143 = vmatpush.msra.mxu0 0.0
    %1144 = vmatpush.msra.mxu0 0.0
    %1145 = vmatpush.msra.mxu0 0.0
    %1146 = vmatpush.msra.mxu0 0.0
    %1147 = vmatpush.msra.mxu0 0.0
    %1148 = vmatpush.msra.mxu0 0.0
    %v1149 = vand.u32 %v1093, 4294901760
    %v1150 = vsub.f32 %v1093, %v1149
    %v1151 = vand.u32 %v1150, 4294901760
    %v1152 = vsub.f32 %v1150, %v1151
    %v1153 = vand.u32 %v1152, 4294901760
    %1154 = vmatpush.msra.mxu0 %v1153
    %v1155 = vand.u32 %v1092, 4294901760
    %v1156 = vsub.f32 %v1092, %v1155
    %v1157 = vand.u32 %v1156, 4294901760
    %v1158 = vsub.f32 %v1156, %v1157
    %v1159 = vand.u32 %v1158, 4294901760
    %1160 = vmatpush.msra.mxu0 %v1159
    %v1161 = vand.u32 %v1091, 4294901760
    %v1162 = vsub.f32 %v1091, %v1161
    %v1163 = vand.u32 %v1162, 4294901760
    %v1164 = vsub.f32 %v1162, %v1163
    %v1165 = vand.u32 %v1164, 4294901760
    %1166 = vmatpush.msra.mxu0 %v1165
    %v1167 = vand.u32 %v1090, 4294901760
    %v1168 = vsub.f32 %v1090, %v1167
    %v1169 = vand.u32 %v1168, 4294901760
    %v1170 = vsub.f32 %v1168, %v1169
    %v1171 = vand.u32 %v1170, 4294901760
    %1172 = vmatpush.msra.mxu0 %v1171
    %v1173 = vand.u32 %v1095, 4294901760
    %1174 = vmatmul.f32.gmra.mxu0 %v1173
    %v1175 = vpop.f32.mrf.mxu0
    %v1176 = vadd.f32 %v1127, %v1175
    %v1177 = vand.u32 %v1098, 4294901760
    %1178 = vmatmul.f32.gmra.mxu0 %v1177
    %v1179 = vpop.f32.mrf.mxu0
    %v1180 = vadd.f32 %v1135, %v1179
    %1181 = vdwg.mxu0
    %1182 = vmatpush.msra.mxu0 0.0
    %1183 = vmatpush.msra.mxu0 0.0
    %1184 = vmatpush.msra.mxu0 0.0
    %1185 = vmatpush.msra.mxu0 0.0
    %1186 = vmatpush.msra.mxu0 0.0
    %1187 = vmatpush.msra.mxu0 0.0
    %1188 = vmatpush.msra.mxu0 0.0
    %1189 = vmatpush.msra.mxu0 0.0
    %1190 = vmatpush.msra.mxu0 0.0
    %1191 = vmatpush.msra.mxu0 0.0
    %1192 = vmatpush.msra.mxu0 0.0
    %1193 = vmatpush.msra.mxu0 0.0
    %v1194 = vand.u32 %v1093, 4294901760
    %v1195 = vsub.f32 %v1093, %v1194
    %1196 = vmatpush.msra.mxu0 %v1195
    %v1197 = vand.u32 %v1092, 4294901760
    %v1198 = vsub.f32 %v1092, %v1197
    %1199 = vmatpush.msra.mxu0 %v1198
    %v1200 = vand.u32 %v1091, 4294901760
    %v1201 = vsub.f32 %v1091, %v1200
    %1202 = vmatpush.msra.mxu0 %v1201
    %v1203 = vand.u32 %v1090, 4294901760
    %v1204 = vsub.f32 %v1090, %v1203
    %1205 = vmatpush.msra.mxu0 %v1204
    %v1206 = vand.u32 %v1095, 4294901760
    %v1207 = vsub.f32 %v1095, %v1206
    %1208 = vmatmul.f32.gmra.mxu0 %v1207
    %v1209 = vpop.f32.mrf.mxu0
    %v1210 = vadd.f32 %v1176, %v1209
    %v1211 = vand.u32 %v1098, 4294901760
    %v1212 = vsub.f32 %v1098, %v1211
    %1213 = vmatmul.f32.gmra.mxu0 %v1212
    %v1214 = vpop.f32.mrf.mxu0
    %v1215 = vadd.f32 %v1180, %v1214
    %1216 = vdwg.mxu0
    %1217 = vmatpush.msra.mxu0 0.0
    %1218 = vmatpush.msra.mxu0 0.0
    %1219 = vmatpush.msra.mxu0 0.0
    %1220 = vmatpush.msra.mxu0 0.0
    %1221 = vmatpush.msra.mxu0 0.0
    %1222 = vmatpush.msra.mxu0 0.0
    %1223 = vmatpush.msra.mxu0 0.0
    %1224 = vmatpush.msra.mxu0 0.0
    %1225 = vmatpush.msra.mxu0 0.0
    %1226 = vmatpush.msra.mxu0 0.0
    %1227 = vmatpush.msra.mxu0 0.0
    %1228 = vmatpush.msra.mxu0 0.0
    %v1229 = vand.u32 %v1093, 4294901760
    %1230 = vmatpush.msra.mxu0 %v1229
    %v1231 = vand.u32 %v1092, 4294901760
    %1232 = vmatpush.msra.mxu0 %v1231
    %v1233 = vand.u32 %v1091, 4294901760
    %1234 = vmatpush.msra.mxu0 %v1233
    %v1235 = vand.u32 %v1090, 4294901760
    %1236 = vmatpush.msra.mxu0 %v1235
    %v1237 = vand.u32 %v1095, 4294901760
    %v1238 = vsub.f32 %v1095, %v1237
    %v1239 = vand.u32 %v1238, 4294901760
    %1240 = vmatmul.f32.gmra.mxu0 %v1239
    %v1241 = vpop.f32.mrf.mxu0
    %v1242 = vadd.f32 %v1210, %v1241
    %v1243 = vand.u32 %v1098, 4294901760
    %v1244 = vsub.f32 %v1098, %v1243
    %v1245 = vand.u32 %v1244, 4294901760
    %1246 = vmatmul.f32.gmra.mxu0 %v1245
    %v1247 = vpop.f32.mrf.mxu0
    %v1248 = vadd.f32 %v1215, %v1247
    %1249 = vdwg.mxu0
    %1250 = vmatpush.msra.mxu0 0.0
    %1251 = vmatpush.msra.mxu0 0.0
    %1252 = vmatpush.msra.mxu0 0.0
    %1253 = vmatpush.msra.mxu0 0.0
    %1254 = vmatpush.msra.mxu0 0.0
    %1255 = vmatpush.msra.mxu0 0.0
    %1256 = vmatpush.msra.mxu0 0.0
    %1257 = vmatpush.msra.mxu0 0.0
    %1258 = vmatpush.msra.mxu0 0.0
    %1259 = vmatpush.msra.mxu0 0.0
    %1260 = vmatpush.msra.mxu0 0.0
    %1261 = vmatpush.msra.mxu0 0.0
    %v1262 = vand.u32 %v1093, 4294901760
    %v1263 = vsub.f32 %v1093, %v1262
    %v1264 = vand.u32 %v1263, 4294901760
    %1265 = vmatpush.msra.mxu0 %v1264
    %v1266 = vand.u32 %v1092, 4294901760
    %v1267 = vsub.f32 %v1092, %v1266
    %v1268 = vand.u32 %v1267, 4294901760
    %1269 = vmatpush.msra.mxu0 %v1268
    %v1270 = vand.u32 %v1091, 4294901760
    %v1271 = vsub.f32 %v1091, %v1270
    %v1272 = vand.u32 %v1271, 4294901760
    %1273 = vmatpush.msra.mxu0 %v1272
    %v1274 = vand.u32 %v1090, 4294901760
    %v1275 = vsub.f32 %v1090, %v1274
    %v1276 = vand.u32 %v1275, 4294901760
    %1277 = vmatpush.msra.mxu0 %v1276
    %v1278 = vand.u32 %v1095, 4294901760
    %1279 = vmatmul.f32.gmra.mxu0 %v1278
    %v1280 = vpop.f32.mrf.mxu0
    %v1281 = vadd.f32 %v1242, %v1280
    %v1282 = vand.u32 %v1098, 4294901760
    %1283 = vmatmul.f32.gmra.mxu0 %v1282
    %v1284 = vpop.f32.mrf.mxu0
    %v1285 = vadd.f32 %v1248, %v1284
    %1286 = vdwg.mxu0
    %1287 = vmatpush.msra.mxu0 0.0
    %1288 = vmatpush.msra.mxu0 0.0
    %1289 = vmatpush.msra.mxu0 0.0
    %1290 = vmatpush.msra.mxu0 0.0
    %1291 = vmatpush.msra.mxu0 0.0
    %1292 = vmatpush.msra.mxu0 0.0
    %1293 = vmatpush.msra.mxu0 0.0
    %1294 = vmatpush.msra.mxu0 0.0
    %1295 = vmatpush.msra.mxu0 0.0
    %1296 = vmatpush.msra.mxu0 0.0
    %1297 = vmatpush.msra.mxu0 0.0
    %1298 = vmatpush.msra.mxu0 0.0
    %v1299 = vand.u32 %v1093, 4294901760
    %1300 = vmatpush.msra.mxu0 %v1299
    %v1301 = vand.u32 %v1092, 4294901760
    %1302 = vmatpush.msra.mxu0 %v1301
    %v1303 = vand.u32 %v1091, 4294901760
    %1304 = vmatpush.msra.mxu0 %v1303
    %v1305 = vand.u32 %v1090, 4294901760
    %1306 = vmatpush.msra.mxu0 %v1305
    %v1307 = vand.u32 %v1095, 4294901760
    %1308 = vmatmul.f32.gmra.mxu0 %v1307
    %v1309 = vpop.f32.mrf.mxu0
    %v1310 = vadd.f32 %v1281, %v1309
    %v1311 = vand.u32 %v1098, 4294901760
    %1312 = vmatmul.f32.gmra.mxu0 %v1311
    %v1313 = vpop.f32.mrf.mxu0
    %v1314 = vadd.f32 %v1285, %v1313
    %1315 = vdwg.mxu0
    %v1316 = vsub.f32 0.0, %v1310
    %v1317 = vsub.f32 0.0, %v1314
    %v1318 = vmul.f32 %v1316, 1.442695
    %v1319 = vpow.pop %v1318
    %v1320 = vmul.f32 %v1317, 1.442695
    %v1321 = vpow.pop %v1320
    %v1322 = vadd.f32 %v1319, 1.0
    %v1323 = vadd.f32 %v1321, 1.0
    %v1324 = vrcp.pop %v1322
    %v1325 = vmul.f32 %v1322, %v1324
    %v1326 = vsub.f32 1.0, %v1325
    %v1327 = vmul.f32 %v1324, %v1326
    %v1328 = vadd.f32 %v1324, %v1327
    %vm1329 = vweird.f32 %v1322
    %vm1330 = vweird.f32 %v1324
    %vm1331 = vmor %vm1329, %vm1330
    %v1332 = vsel %vm1331, %v1324, %v1328
    %v1333 = vand.u32 2147483647, %v1322
    %vm1334 = vcmp.eq.f32.partialorder %v1333, 8.507059e+37
    %v1335 = vand.u32 %v1322, 2147483648
    %v1336 = vor.u32 1.1754944e-38, %v1335
    %v1337 = vsel %vm1334, %v1336, %v1332
    %v1338 = vmul.f32 1.0, %v1337
    %v1339 = vrcp.pop %v1323
    %v1340 = vmul.f32 %v1323, %v1339
    %v1341 = vsub.f32 1.0, %v1340
    %v1342 = vmul.f32 %v1339, %v1341
    %v1343 = vadd.f32 %v1339, %v1342
    %vm1344 = vweird.f32 %v1323
    %vm1345 = vweird.f32 %v1339
    %vm1346 = vmor %vm1344, %vm1345
    %v1347 = vsel %vm1346, %v1339, %v1343
    %v1348 = vand.u32 2147483647, %v1323
    %vm1349 = vcmp.eq.f32.partialorder %v1348, 8.507059e+37
    %v1350 = vand.u32 %v1323, 2147483648
    %v1351 = vor.u32 1.1754944e-38, %v1350
    %v1352 = vsel %vm1349, %v1351, %v1347
    %v1353 = vmul.f32 1.0, %v1352
    %v1354 = vmul.f32 %v1310, %v1338
    %v1355 = vmul.f32 %v1314, %v1353
    %s1356 = scalar_lea.vmem %s3, 32
    %1357 = vst [vmem:[%s1356] sm:$0xff] %v1354
    %1358 = vst [vmem:[%s1356 + $0x8] sm:$0xff] %v1355
    %1359 = vmatpush.msra.mxu0 0.0
    %1360 = vmatpush.msra.mxu0 0.0
    %1361 = vmatpush.msra.mxu0 0.0
    %1362 = vmatpush.msra.mxu0 0.0
    %1363 = vmatpush.msra.mxu0 0.0
    %1364 = vmatpush.msra.mxu0 0.0
    %1365 = vmatpush.msra.mxu0 0.0
    %1366 = vmatpush.msra.mxu0 0.0
    %1367 = vmatpush.msra.mxu0 0.0
    %1368 = vmatpush.msra.mxu0 0.0
    %1369 = vmatpush.msra.mxu0 0.0
    %1370 = vmatpush.msra.mxu0 0.0
    %1371 = vmatpush.msra.mxu0 0.0
    %1372 = vmatpush.msra.mxu0 0.0
    %v1373 = vand.u32 %v1355, 4294901760
    %1374 = vmatpush.msra.mxu0 %v1373
    %v1375 = vand.u32 %v1354, 4294901760
    %1376 = vmatpush.msra.mxu0 %v1375
    %v1377 = vand.u32 %v39, 4294901760
    %v1378 = vsub.f32 %v39, %v1377
    %v1379 = vand.u32 %v1378, 4294901760
    %v1380 = vsub.f32 %v1378, %v1379
    %v1381 = vand.u32 %v1380, 4294901760
    %1382 = vmatmul.f32.gmra.mxu0 %v1381
    %v1383 = vpop.f32.mrf.mxu0
    %v1384 = vadd.f32 0.0, %v1383
    %v1385 = vand.u32 %v42, 4294901760
    %v1386 = vsub.f32 %v42, %v1385
    %v1387 = vand.u32 %v1386, 4294901760
    %v1388 = vsub.f32 %v1386, %v1387
    %v1389 = vand.u32 %v1388, 4294901760
    %1390 = vmatmul.f32.gmra.mxu0 %v1389
    %v1391 = vpop.f32.mrf.mxu0
    %v1392 = vadd.f32 0.0, %v1391
    %1393 = vdwg.mxu0
    %1394 = vmatpush.msra.mxu0 0.0
    %1395 = vmatpush.msra.mxu0 0.0
    %1396 = vmatpush.msra.mxu0 0.0
    %1397 = vmatpush.msra.mxu0 0.0
    %1398 = vmatpush.msra.mxu0 0.0
    %1399 = vmatpush.msra.mxu0 0.0
    %1400 = vmatpush.msra.mxu0 0.0
    %1401 = vmatpush.msra.mxu0 0.0
    %1402 = vmatpush.msra.mxu0 0.0
    %1403 = vmatpush.msra.mxu0 0.0
    %1404 = vmatpush.msra.mxu0 0.0
    %1405 = vmatpush.msra.mxu0 0.0
    %1406 = vmatpush.msra.mxu0 0.0
    %1407 = vmatpush.msra.mxu0 0.0
    %v1408 = vand.u32 %v1355, 4294901760
    %v1409 = vsub.f32 %v1355, %v1408
    %v1410 = vand.u32 %v1409, 4294901760
    %v1411 = vsub.f32 %v1409, %v1410
    %v1412 = vand.u32 %v1411, 4294901760
    %1413 = vmatpush.msra.mxu0 %v1412
    %v1414 = vand.u32 %v1354, 4294901760
    %v1415 = vsub.f32 %v1354, %v1414
    %v1416 = vand.u32 %v1415, 4294901760
    %v1417 = vsub.f32 %v1415, %v1416
    %v1418 = vand.u32 %v1417, 4294901760
    %1419 = vmatpush.msra.mxu0 %v1418
    %v1420 = vand.u32 %v39, 4294901760
    %1421 = vmatmul.f32.gmra.mxu0 %v1420
    %v1422 = vpop.f32.mrf.mxu0
    %v1423 = vadd.f32 %v1384, %v1422
    %v1424 = vand.u32 %v42, 4294901760
    %1425 = vmatmul.f32.gmra.mxu0 %v1424
    %v1426 = vpop.f32.mrf.mxu0
    %v1427 = vadd.f32 %v1392, %v1426
    %1428 = vdwg.mxu0
    %1429 = vmatpush.msra.mxu0 0.0
    %1430 = vmatpush.msra.mxu0 0.0
    %1431 = vmatpush.msra.mxu0 0.0
    %1432 = vmatpush.msra.mxu0 0.0
    %1433 = vmatpush.msra.mxu0 0.0
    %1434 = vmatpush.msra.mxu0 0.0
    %1435 = vmatpush.msra.mxu0 0.0
    %1436 = vmatpush.msra.mxu0 0.0
    %1437 = vmatpush.msra.mxu0 0.0
    %1438 = vmatpush.msra.mxu0 0.0
    %1439 = vmatpush.msra.mxu0 0.0
    %1440 = vmatpush.msra.mxu0 0.0
    %1441 = vmatpush.msra.mxu0 0.0
    %1442 = vmatpush.msra.mxu0 0.0
    %v1443 = vand.u32 %v1355, 4294901760
    %v1444 = vsub.f32 %v1355, %v1443
    %1445 = vmatpush.msra.mxu0 %v1444
    %v1446 = vand.u32 %v1354, 4294901760
    %v1447 = vsub.f32 %v1354, %v1446
    %1448 = vmatpush.msra.mxu0 %v1447
    %v1449 = vand.u32 %v39, 4294901760
    %v1450 = vsub.f32 %v39, %v1449
    %1451 = vmatmul.f32.gmra.mxu0 %v1450
    %v1452 = vpop.f32.mrf.mxu0
    %v1453 = vadd.f32 %v1423, %v1452
    %v1454 = vand.u32 %v42, 4294901760
    %v1455 = vsub.f32 %v42, %v1454
    %1456 = vmatmul.f32.gmra.mxu0 %v1455
    %v1457 = vpop.f32.mrf.mxu0
    %v1458 = vadd.f32 %v1427, %v1457
    %1459 = vdwg.mxu0
    %1460 = vmatpush.msra.mxu0 0.0
    %1461 = vmatpush.msra.mxu0 0.0
    %1462 = vmatpush.msra.mxu0 0.0
    %1463 = vmatpush.msra.mxu0 0.0
    %1464 = vmatpush.msra.mxu0 0.0
    %1465 = vmatpush.msra.mxu0 0.0
    %1466 = vmatpush.msra.mxu0 0.0
    %1467 = vmatpush.msra.mxu0 0.0
    %1468 = vmatpush.msra.mxu0 0.0
    %1469 = vmatpush.msra.mxu0 0.0
    %1470 = vmatpush.msra.mxu0 0.0
    %1471 = vmatpush.msra.mxu0 0.0
    %1472 = vmatpush.msra.mxu0 0.0
    %1473 = vmatpush.msra.mxu0 0.0
    %v1474 = vand.u32 %v1355, 4294901760
    %1475 = vmatpush.msra.mxu0 %v1474
    %v1476 = vand.u32 %v1354, 4294901760
    %1477 = vmatpush.msra.mxu0 %v1476
    %v1478 = vand.u32 %v39, 4294901760
    %v1479 = vsub.f32 %v39, %v1478
    %v1480 = vand.u32 %v1479, 4294901760
    %1481 = vmatmul.f32.gmra.mxu0 %v1480
    %v1482 = vpop.f32.mrf.mxu0
    %v1483 = vadd.f32 %v1453, %v1482
    %v1484 = vand.u32 %v42, 4294901760
    %v1485 = vsub.f32 %v42, %v1484
    %v1486 = vand.u32 %v1485, 4294901760
    %1487 = vmatmul.f32.gmra.mxu0 %v1486
    %v1488 = vpop.f32.mrf.mxu0
    %v1489 = vadd.f32 %v1458, %v1488
    %1490 = vdwg.mxu0
    %1491 = vmatpush.msra.mxu0 0.0
    %1492 = vmatpush.msra.mxu0 0.0
    %1493 = vmatpush.msra.mxu0 0.0
    %1494 = vmatpush.msra.mxu0 0.0
    %1495 = vmatpush.msra.mxu0 0.0
    %1496 = vmatpush.msra.mxu0 0.0
    %1497 = vmatpush.msra.mxu0 0.0
    %1498 = vmatpush.msra.mxu0 0.0
    %1499 = vmatpush.msra.mxu0 0.0
    %1500 = vmatpush.msra.mxu0 0.0
    %1501 = vmatpush.msra.mxu0 0.0
    %1502 = vmatpush.msra.mxu0 0.0
    %1503 = vmatpush.msra.mxu0 0.0
    %1504 = vmatpush.msra.mxu0 0.0
    %v1505 = vand.u32 %v1355, 4294901760
    %v1506 = vsub.f32 %v1355, %v1505
    %v1507 = vand.u32 %v1506, 4294901760
    %1508 = vmatpush.msra.mxu0 %v1507
    %v1509 = vand.u32 %v1354, 4294901760
    %v1510 = vsub.f32 %v1354, %v1509
    %v1511 = vand.u32 %v1510, 4294901760
    %1512 = vmatpush.msra.mxu0 %v1511
    %v1513 = vand.u32 %v39, 4294901760
    %1514 = vmatmul.f32.gmra.mxu0 %v1513
    %v1515 = vpop.f32.mrf.mxu0
    %v1516 = vadd.f32 %v1483, %v1515
    %v1517 = vand.u32 %v42, 4294901760
    %1518 = vmatmul.f32.gmra.mxu0 %v1517
    %v1519 = vpop.f32.mrf.mxu0
    %v1520 = vadd.f32 %v1489, %v1519
    %1521 = vdwg.mxu0
    %1522 = vmatpush.msra.mxu0 0.0
    %1523 = vmatpush.msra.mxu0 0.0
    %1524 = vmatpush.msra.mxu0 0.0
    %1525 = vmatpush.msra.mxu0 0.0
    %1526 = vmatpush.msra.mxu0 0.0
    %1527 = vmatpush.msra.mxu0 0.0
    %1528 = vmatpush.msra.mxu0 0.0
    %1529 = vmatpush.msra.mxu0 0.0
    %1530 = vmatpush.msra.mxu0 0.0
    %1531 = vmatpush.msra.mxu0 0.0
    %1532 = vmatpush.msra.mxu0 0.0
    %1533 = vmatpush.msra.mxu0 0.0
    %1534 = vmatpush.msra.mxu0 0.0
    %1535 = vmatpush.msra.mxu0 0.0
    %v1536 = vand.u32 %v1355, 4294901760
    %1537 = vmatpush.msra.mxu0 %v1536
    %v1538 = vand.u32 %v1354, 4294901760
    %1539 = vmatpush.msra.mxu0 %v1538
    %v1540 = vand.u32 %v39, 4294901760
    %1541 = vmatmul.f32.gmra.mxu0 %v1540
    %v1542 = vpop.f32.mrf.mxu0
    %v1543 = vadd.f32 %v1516, %v1542
    %v1544 = vand.u32 %v42, 4294901760
    %1545 = vmatmul.f32.gmra.mxu0 %v1544
    %v1546 = vpop.f32.mrf.mxu0
    %v1547 = vadd.f32 %v1520, %v1546
    %1548 = vdwg.mxu0
    %s1549 = scalar_lea.vmem [#allocation2], 96
    %v1550 = vld [vmem:[%s1549] sm:$0xff]
    %v1551 = vld [vmem:[%s1549 + $0x8] sm:$0xff]
    %v1552 = vld [vmem:[%s1549 + $0x10] sm:$0xff]
    %v1553 = vld [vmem:[%s1549 + $0x18] sm:$0xff]
    %v1555 = vsel %vm238, %v1543, 0
    %v1558 = vsel %vm238, %v1547, 0
    %1560 = vmatpush.msra.mxu0 0.0
    %1561 = vmatpush.msra.mxu0 0.0
    %1562 = vmatpush.msra.mxu0 0.0
    %1563 = vmatpush.msra.mxu0 0.0
    %1564 = vmatpush.msra.mxu0 0.0
    %1565 = vmatpush.msra.mxu0 0.0
    %1566 = vmatpush.msra.mxu0 0.0
    %1567 = vmatpush.msra.mxu0 0.0
    %1568 = vmatpush.msra.mxu0 0.0
    %1569 = vmatpush.msra.mxu0 0.0
    %1570 = vmatpush.msra.mxu0 0.0
    %1571 = vmatpush.msra.mxu0 0.0
    %v1572 = vand.u32 %v1553, 4294901760
    %1573 = vmatpush.msra.mxu0 %v1572
    %v1574 = vand.u32 %v1552, 4294901760
    %1575 = vmatpush.msra.mxu0 %v1574
    %v1576 = vand.u32 %v1551, 4294901760
    %1577 = vmatpush.msra.mxu0 %v1576
    %v1578 = vand.u32 %v1550, 4294901760
    %1579 = vmatpush.msra.mxu0 %v1578
    %v1580 = vand.u32 %v1555, 4294901760
    %v1581 = vsub.f32 %v1555, %v1580
    %v1582 = vand.u32 %v1581, 4294901760
    %v1583 = vsub.f32 %v1581, %v1582
    %v1584 = vand.u32 %v1583, 4294901760
    %1585 = vmatmul.f32.gmra.mxu0 %v1584
    %v1586 = vpop.f32.mrf.mxu0
    %v1587 = vadd.f32 0.0, %v1586
    %v1588 = vand.u32 %v1558, 4294901760
    %v1589 = vsub.f32 %v1558, %v1588
    %v1590 = vand.u32 %v1589, 4294901760
    %v1591 = vsub.f32 %v1589, %v1590
    %v1592 = vand.u32 %v1591, 4294901760
    %1593 = vmatmul.f32.gmra.mxu0 %v1592
    %v1594 = vpop.f32.mrf.mxu0
    %v1595 = vadd.f32 0.0, %v1594
    %1596 = vdwg.mxu0
    %1597 = vmatpush.msra.mxu0 0.0
    %1598 = vmatpush.msra.mxu0 0.0
    %1599 = vmatpush.msra.mxu0 0.0
    %1600 = vmatpush.msra.mxu0 0.0
    %1601 = vmatpush.msra.mxu0 0.0
    %1602 = vmatpush.msra.mxu0 0.0
    %1603 = vmatpush.msra.mxu0 0.0
    %1604 = vmatpush.msra.mxu0 0.0
    %1605 = vmatpush.msra.mxu0 0.0
    %1606 = vmatpush.msra.mxu0 0.0
    %1607 = vmatpush.msra.mxu0 0.0
    %1608 = vmatpush.msra.mxu0 0.0
    %v1609 = vand.u32 %v1553, 4294901760
    %v1610 = vsub.f32 %v1553, %v1609
    %v1611 = vand.u32 %v1610, 4294901760
    %v1612 = vsub.f32 %v1610, %v1611
    %v1613 = vand.u32 %v1612, 4294901760
    %1614 = vmatpush.msra.mxu0 %v1613
    %v1615 = vand.u32 %v1552, 4294901760
    %v1616 = vsub.f32 %v1552, %v1615
    %v1617 = vand.u32 %v1616, 4294901760
    %v1618 = vsub.f32 %v1616, %v1617
    %v1619 = vand.u32 %v1618, 4294901760
    %1620 = vmatpush.msra.mxu0 %v1619
    %v1621 = vand.u32 %v1551, 4294901760
    %v1622 = vsub.f32 %v1551, %v1621
    %v1623 = vand.u32 %v1622, 4294901760
    %v1624 = vsub.f32 %v1622, %v1623
    %v1625 = vand.u32 %v1624, 4294901760
    %1626 = vmatpush.msra.mxu0 %v1625
    %v1627 = vand.u32 %v1550, 4294901760
    %v1628 = vsub.f32 %v1550, %v1627
    %v1629 = vand.u32 %v1628, 4294901760
    %v1630 = vsub.f32 %v1628, %v1629
    %v1631 = vand.u32 %v1630, 4294901760
    %1632 = vmatpush.msra.mxu0 %v1631
    %v1633 = vand.u32 %v1555, 4294901760
    %1634 = vmatmul.f32.gmra.mxu0 %v1633
    %v1635 = vpop.f32.mrf.mxu0
    %v1636 = vadd.f32 %v1587, %v1635
    %v1637 = vand.u32 %v1558, 4294901760
    %1638 = vmatmul.f32.gmra.mxu0 %v1637
    %v1639 = vpop.f32.mrf.mxu0
    %v1640 = vadd.f32 %v1595, %v1639
    %1641 = vdwg.mxu0
    %1642 = vmatpush.msra.mxu0 0.0
    %1643 = vmatpush.msra.mxu0 0.0
    %1644 = vmatpush.msra.mxu0 0.0
    %1645 = vmatpush.msra.mxu0 0.0
    %1646 = vmatpush.msra.mxu0 0.0
    %1647 = vmatpush.msra.mxu0 0.0
    %1648 = vmatpush.msra.mxu0 0.0
    %1649 = vmatpush.msra.mxu0 0.0
    %1650 = vmatpush.msra.mxu0 0.0
    %1651 = vmatpush.msra.mxu0 0.0
    %1652 = vmatpush.msra.mxu0 0.0
    %1653 = vmatpush.msra.mxu0 0.0
    %v1654 = vand.u32 %v1553, 4294901760
    %v1655 = vsub.f32 %v1553, %v1654
    %1656 = vmatpush.msra.mxu0 %v1655
    %v1657 = vand.u32 %v1552, 4294901760
    %v1658 = vsub.f32 %v1552, %v1657
    %1659 = vmatpush.msra.mxu0 %v1658
    %v1660 = vand.u32 %v1551, 4294901760
    %v1661 = vsub.f32 %v1551, %v1660
    %1662 = vmatpush.msra.mxu0 %v1661
    %v1663 = vand.u32 %v1550, 4294901760
    %v1664 = vsub.f32 %v1550, %v1663
    %1665 = vmatpush.msra.mxu0 %v1664
    %v1666 = vand.u32 %v1555, 4294901760
    %v1667 = vsub.f32 %v1555, %v1666
    %1668 = vmatmul.f32.gmra.mxu0 %v1667
    %v1669 = vpop.f32.mrf.mxu0
    %v1670 = vadd.f32 %v1636, %v1669
    %v1671 = vand.u32 %v1558, 4294901760
    %v1672 = vsub.f32 %v1558, %v1671
    %1673 = vmatmul.f32.gmra.mxu0 %v1672
    %v1674 = vpop.f32.mrf.mxu0
    %v1675 = vadd.f32 %v1640, %v1674
    %1676 = vdwg.mxu0
    %1677 = vmatpush.msra.mxu0 0.0
    %1678 = vmatpush.msra.mxu0 0.0
    %1679 = vmatpush.msra.mxu0 0.0
    %1680 = vmatpush.msra.mxu0 0.0
    %1681 = vmatpush.msra.mxu0 0.0
    %1682 = vmatpush.msra.mxu0 0.0
    %1683 = vmatpush.msra.mxu0 0.0
    %1684 = vmatpush.msra.mxu0 0.0
    %1685 = vmatpush.msra.mxu0 0.0
    %1686 = vmatpush.msra.mxu0 0.0
    %1687 = vmatpush.msra.mxu0 0.0
    %1688 = vmatpush.msra.mxu0 0.0
    %v1689 = vand.u32 %v1553, 4294901760
    %1690 = vmatpush.msra.mxu0 %v1689
    %v1691 = vand.u32 %v1552, 4294901760
    %1692 = vmatpush.msra.mxu0 %v1691
    %v1693 = vand.u32 %v1551, 4294901760
    %1694 = vmatpush.msra.mxu0 %v1693
    %v1695 = vand.u32 %v1550, 4294901760
    %1696 = vmatpush.msra.mxu0 %v1695
    %v1697 = vand.u32 %v1555, 4294901760
    %v1698 = vsub.f32 %v1555, %v1697
    %v1699 = vand.u32 %v1698, 4294901760
    %1700 = vmatmul.f32.gmra.mxu0 %v1699
    %v1701 = vpop.f32.mrf.mxu0
    %v1702 = vadd.f32 %v1670, %v1701
    %v1703 = vand.u32 %v1558, 4294901760
    %v1704 = vsub.f32 %v1558, %v1703
    %v1705 = vand.u32 %v1704, 4294901760
    %1706 = vmatmul.f32.gmra.mxu0 %v1705
    %v1707 = vpop.f32.mrf.mxu0
    %v1708 = vadd.f32 %v1675, %v1707
    %1709 = vdwg.mxu0
    %1710 = vmatpush.msra.mxu0 0.0
    %1711 = vmatpush.msra.mxu0 0.0
    %1712 = vmatpush.msra.mxu0 0.0
    %1713 = vmatpush.msra.mxu0 0.0
    %1714 = vmatpush.msra.mxu0 0.0
    %1715 = vmatpush.msra.mxu0 0.0
    %1716 = vmatpush.msra.mxu0 0.0
    %1717 = vmatpush.msra.mxu0 0.0
    %1718 = vmatpush.msra.mxu0 0.0
    %1719 = vmatpush.msra.mxu0 0.0
    %1720 = vmatpush.msra.mxu0 0.0
    %1721 = vmatpush.msra.mxu0 0.0
    %v1722 = vand.u32 %v1553, 4294901760
    %v1723 = vsub.f32 %v1553, %v1722
    %v1724 = vand.u32 %v1723, 4294901760
    %1725 = vmatpush.msra.mxu0 %v1724
    %v1726 = vand.u32 %v1552, 4294901760
    %v1727 = vsub.f32 %v1552, %v1726
    %v1728 = vand.u32 %v1727, 4294901760
    %1729 = vmatpush.msra.mxu0 %v1728
    %v1730 = vand.u32 %v1551, 4294901760
    %v1731 = vsub.f32 %v1551, %v1730
    %v1732 = vand.u32 %v1731, 4294901760
    %1733 = vmatpush.msra.mxu0 %v1732
    %v1734 = vand.u32 %v1550, 4294901760
    %v1735 = vsub.f32 %v1550, %v1734
    %v1736 = vand.u32 %v1735, 4294901760
    %1737 = vmatpush.msra.mxu0 %v1736
    %v1738 = vand.u32 %v1555, 4294901760
    %1739 = vmatmul.f32.gmra.mxu0 %v1738
    %v1740 = vpop.f32.mrf.mxu0
    %v1741 = vadd.f32 %v1702, %v1740
    %v1742 = vand.u32 %v1558, 4294901760
    %1743 = vmatmul.f32.gmra.mxu0 %v1742
    %v1744 = vpop.f32.mrf.mxu0
    %v1745 = vadd.f32 %v1708, %v1744
    %1746 = vdwg.mxu0
    %1747 = vmatpush.msra.mxu0 0.0
    %1748 = vmatpush.msra.mxu0 0.0
    %1749 = vmatpush.msra.mxu0 0.0
    %1750 = vmatpush.msra.mxu0 0.0
    %1751 = vmatpush.msra.mxu0 0.0
    %1752 = vmatpush.msra.mxu0 0.0
    %1753 = vmatpush.msra.mxu0 0.0
    %1754 = vmatpush.msra.mxu0 0.0
    %1755 = vmatpush.msra.mxu0 0.0
    %1756 = vmatpush.msra.mxu0 0.0
    %1757 = vmatpush.msra.mxu0 0.0
    %1758 = vmatpush.msra.mxu0 0.0
    %v1759 = vand.u32 %v1553, 4294901760
    %1760 = vmatpush.msra.mxu0 %v1759
    %v1761 = vand.u32 %v1552, 4294901760
    %1762 = vmatpush.msra.mxu0 %v1761
    %v1763 = vand.u32 %v1551, 4294901760
    %1764 = vmatpush.msra.mxu0 %v1763
    %v1765 = vand.u32 %v1550, 4294901760
    %1766 = vmatpush.msra.mxu0 %v1765
    %v1767 = vand.u32 %v1555, 4294901760
    %1768 = vmatmul.f32.gmra.mxu0 %v1767
    %v1769 = vpop.f32.mrf.mxu0
    %v1770 = vadd.f32 %v1741, %v1769
    %v1771 = vand.u32 %v1558, 4294901760
    %1772 = vmatmul.f32.gmra.mxu0 %v1771
    %v1773 = vpop.f32.mrf.mxu0
    %v1774 = vadd.f32 %v1745, %v1773
    %1775 = vdwg.mxu0
    %v1776 = vmax.f32 %v1770, 0.0
    %v1777 = vmax.f32 %v1774, 0.0
    %s1778 = scalar_lea.vmem %s3, 48
    %1779 = vst [vmem:[%s1778] sm:$0xff] %v1776
    %1780 = vst [vmem:[%s1778 + $0x8] sm:$0xff] %v1777
    %1781 = vmatpush.msra.mxu0 0.0
    %1782 = vmatpush.msra.mxu0 0.0
    %1783 = vmatpush.msra.mxu0 0.0
    %1784 = vmatpush.msra.mxu0 0.0
    %1785 = vmatpush.msra.mxu0 0.0
    %1786 = vmatpush.msra.mxu0 0.0
    %1787 = vmatpush.msra.mxu0 0.0
    %1788 = vmatpush.msra.mxu0 0.0
    %1789 = vmatpush.msra.mxu0 0.0
    %1790 = vmatpush.msra.mxu0 0.0
    %1791 = vmatpush.msra.mxu0 0.0
    %1792 = vmatpush.msra.mxu0 0.0
    %1793 = vmatpush.msra.mxu0 0.0
    %1794 = vmatpush.msra.mxu0 0.0
    %v1795 = vand.u32 %v1777, 4294901760
    %1796 = vmatpush.msra.mxu0 %v1795
    %v1797 = vand.u32 %v1776, 4294901760
    %1798 = vmatpush.msra.mxu0 %v1797
    %v1799 = vand.u32 %v39, 4294901760
    %v1800 = vsub.f32 %v39, %v1799
    %v1801 = vand.u32 %v1800, 4294901760
    %v1802 = vsub.f32 %v1800, %v1801
    %v1803 = vand.u32 %v1802, 4294901760
    %1804 = vmatmul.f32.gmra.mxu0 %v1803
    %v1805 = vpop.f32.mrf.mxu0
    %v1806 = vadd.f32 0.0, %v1805
    %v1807 = vand.u32 %v42, 4294901760
    %v1808 = vsub.f32 %v42, %v1807
    %v1809 = vand.u32 %v1808, 4294901760
    %v1810 = vsub.f32 %v1808, %v1809
    %v1811 = vand.u32 %v1810, 4294901760
    %1812 = vmatmul.f32.gmra.mxu0 %v1811
    %v1813 = vpop.f32.mrf.mxu0
    %v1814 = vadd.f32 0.0, %v1813
    %1815 = vdwg.mxu0
    %1816 = vmatpush.msra.mxu0 0.0
    %1817 = vmatpush.msra.mxu0 0.0
    %1818 = vmatpush.msra.mxu0 0.0
    %1819 = vmatpush.msra.mxu0 0.0
    %1820 = vmatpush.msra.mxu0 0.0
    %1821 = vmatpush.msra.mxu0 0.0
    %1822 = vmatpush.msra.mxu0 0.0
    %1823 = vmatpush.msra.mxu0 0.0
    %1824 = vmatpush.msra.mxu0 0.0
    %1825 = vmatpush.msra.mxu0 0.0
    %1826 = vmatpush.msra.mxu0 0.0
    %1827 = vmatpush.msra.mxu0 0.0
    %1828 = vmatpush.msra.mxu0 0.0
    %1829 = vmatpush.msra.mxu0 0.0
    %v1830 = vand.u32 %v1777, 4294901760
    %v1831 = vsub.f32 %v1777, %v1830
    %v1832 = vand.u32 %v1831, 4294901760
    %v1833 = vsub.f32 %v1831, %v1832
    %v1834 = vand.u32 %v1833, 4294901760
    %1835 = vmatpush.msra.mxu0 %v1834
    %v1836 = vand.u32 %v1776, 4294901760
    %v1837 = vsub.f32 %v1776, %v1836
    %v1838 = vand.u32 %v1837, 4294901760
    %v1839 = vsub.f32 %v1837, %v1838
    %v1840 = vand.u32 %v1839, 4294901760
    %1841 = vmatpush.msra.mxu0 %v1840
    %v1842 = vand.u32 %v39, 4294901760
    %1843 = vmatmul.f32.gmra.mxu0 %v1842
    %v1844 = vpop.f32.mrf.mxu0
    %v1845 = vadd.f32 %v1806, %v1844
    %v1846 = vand.u32 %v42, 4294901760
    %1847 = vmatmul.f32.gmra.mxu0 %v1846
    %v1848 = vpop.f32.mrf.mxu0
    %v1849 = vadd.f32 %v1814, %v1848
    %1850 = vdwg.mxu0
    %1851 = vmatpush.msra.mxu0 0.0
    %1852 = vmatpush.msra.mxu0 0.0
    %1853 = vmatpush.msra.mxu0 0.0
    %1854 = vmatpush.msra.mxu0 0.0
    %1855 = vmatpush.msra.mxu0 0.0
    %1856 = vmatpush.msra.mxu0 0.0
    %1857 = vmatpush.msra.mxu0 0.0
    %1858 = vmatpush.msra.mxu0 0.0
    %1859 = vmatpush.msra.mxu0 0.0
    %1860 = vmatpush.msra.mxu0 0.0
    %1861 = vmatpush.msra.mxu0 0.0
    %1862 = vmatpush.msra.mxu0 0.0
    %1863 = vmatpush.msra.mxu0 0.0
    %1864 = vmatpush.msra.mxu0 0.0
    %v1865 = vand.u32 %v1777, 4294901760
    %v1866 = vsub.f32 %v1777, %v1865
    %1867 = vmatpush.msra.mxu0 %v1866
    %v1868 = vand.u32 %v1776, 4294901760
    %v1869 = vsub.f32 %v1776, %v1868
    %1870 = vmatpush.msra.mxu0 %v1869
    %v1871 = vand.u32 %v39, 4294901760
    %v1872 = vsub.f32 %v39, %v1871
    %1873 = vmatmul.f32.gmra.mxu0 %v1872
    %v1874 = vpop.f32.mrf.mxu0
    %v1875 = vadd.f32 %v1845, %v1874
    %v1876 = vand.u32 %v42, 4294901760
    %v1877 = vsub.f32 %v42, %v1876
    %1878 = vmatmul.f32.gmra.mxu0 %v1877
    %v1879 = vpop.f32.mrf.mxu0
    %v1880 = vadd.f32 %v1849, %v1879
    %1881 = vdwg.mxu0
    %1882 = vmatpush.msra.mxu0 0.0
    %1883 = vmatpush.msra.mxu0 0.0
    %1884 = vmatpush.msra.mxu0 0.0
    %1885 = vmatpush.msra.mxu0 0.0
    %1886 = vmatpush.msra.mxu0 0.0
    %1887 = vmatpush.msra.mxu0 0.0
    %1888 = vmatpush.msra.mxu0 0.0
    %1889 = vmatpush.msra.mxu0 0.0
    %1890 = vmatpush.msra.mxu0 0.0
    %1891 = vmatpush.msra.mxu0 0.0
    %1892 = vmatpush.msra.mxu0 0.0
    %1893 = vmatpush.msra.mxu0 0.0
    %1894 = vmatpush.msra.mxu0 0.0
    %1895 = vmatpush.msra.mxu0 0.0
    %v1896 = vand.u32 %v1777, 4294901760
    %1897 = vmatpush.msra.mxu0 %v1896
    %v1898 = vand.u32 %v1776, 4294901760
    %1899 = vmatpush.msra.mxu0 %v1898
    %v1900 = vand.u32 %v39, 4294901760
    %v1901 = vsub.f32 %v39, %v1900
    %v1902 = vand.u32 %v1901, 4294901760
    %1903 = vmatmul.f32.gmra.mxu0 %v1902
    %v1904 = vpop.f32.mrf.mxu0
    %v1905 = vadd.f32 %v1875, %v1904
    %v1906 = vand.u32 %v42, 4294901760
    %v1907 = vsub.f32 %v42, %v1906
    %v1908 = vand.u32 %v1907, 4294901760
    %1909 = vmatmul.f32.gmra.mxu0 %v1908
    %v1910 = vpop.f32.mrf.mxu0
    %v1911 = vadd.f32 %v1880, %v1910
    %1912 = vdwg.mxu0
    %1913 = vmatpush.msra.mxu0 0.0
    %1914 = vmatpush.msra.mxu0 0.0
    %1915 = vmatpush.msra.mxu0 0.0
    %1916 = vmatpush.msra.mxu0 0.0
    %1917 = vmatpush.msra.mxu0 0.0
    %1918 = vmatpush.msra.mxu0 0.0
    %1919 = vmatpush.msra.mxu0 0.0
    %1920 = vmatpush.msra.mxu0 0.0
    %1921 = vmatpush.msra.mxu0 0.0
    %1922 = vmatpush.msra.mxu0 0.0
    %1923 = vmatpush.msra.mxu0 0.0
    %1924 = vmatpush.msra.mxu0 0.0
    %1925 = vmatpush.msra.mxu0 0.0
    %1926 = vmatpush.msra.mxu0 0.0
    %v1927 = vand.u32 %v1777, 4294901760
    %v1928 = vsub.f32 %v1777, %v1927
    %v1929 = vand.u32 %v1928, 4294901760
    %1930 = vmatpush.msra.mxu0 %v1929
    %v1931 = vand.u32 %v1776, 4294901760
    %v1932 = vsub.f32 %v1776, %v1931
    %v1933 = vand.u32 %v1932, 4294901760
    %1934 = vmatpush.msra.mxu0 %v1933
    %v1935 = vand.u32 %v39, 4294901760
    %1936 = vmatmul.f32.gmra.mxu0 %v1935
    %v1937 = vpop.f32.mrf.mxu0
    %v1938 = vadd.f32 %v1905, %v1937
    %v1939 = vand.u32 %v42, 4294901760
    %1940 = vmatmul.f32.gmra.mxu0 %v1939
    %v1941 = vpop.f32.mrf.mxu0
    %v1942 = vadd.f32 %v1911, %v1941
    %1943 = vdwg.mxu0
    %1944 = vmatpush.msra.mxu0 0.0
    %1945 = vmatpush.msra.mxu0 0.0
    %1946 = vmatpush.msra.mxu0 0.0
    %1947 = vmatpush.msra.mxu0 0.0
    %1948 = vmatpush.msra.mxu0 0.0
    %1949 = vmatpush.msra.mxu0 0.0
    %1950 = vmatpush.msra.mxu0 0.0
    %1951 = vmatpush.msra.mxu0 0.0
    %1952 = vmatpush.msra.mxu0 0.0
    %1953 = vmatpush.msra.mxu0 0.0
    %1954 = vmatpush.msra.mxu0 0.0
    %1955 = vmatpush.msra.mxu0 0.0
    %1956 = vmatpush.msra.mxu0 0.0
    %1957 = vmatpush.msra.mxu0 0.0
    %v1958 = vand.u32 %v1777, 4294901760
    %1959 = vmatpush.msra.mxu0 %v1958
    %v1960 = vand.u32 %v1776, 4294901760
    %1961 = vmatpush.msra.mxu0 %v1960
    %v1962 = vand.u32 %v39, 4294901760
    %1963 = vmatmul.f32.gmra.mxu0 %v1962
    %v1964 = vpop.f32.mrf.mxu0
    %v1965 = vadd.f32 %v1938, %v1964
    %v1966 = vand.u32 %v42, 4294901760
    %1967 = vmatmul.f32.gmra.mxu0 %v1966
    %v1968 = vpop.f32.mrf.mxu0
    %v1969 = vadd.f32 %v1942, %v1968
    %1970 = vdwg.mxu0
    %s1971 = scalar_lea.vmem [#allocation2], 128
    %v1972 = vld [vmem:[%s1971] sm:$0xff]
    %v1973 = vld [vmem:[%s1971 + $0x8] sm:$0xff]
    %v1974 = vld [vmem:[%s1971 + $0x10] sm:$0xff]
    %v1975 = vld [vmem:[%s1971 + $0x18] sm:$0xff]
    %v1977 = vsel %vm238, %v1965, 0
    %v1980 = vsel %vm238, %v1969, 0
    %1982 = vmatpush.msra.mxu0 0.0
    %1983 = vmatpush.msra.mxu0 0.0
    %1984 = vmatpush.msra.mxu0 0.0
    %1985 = vmatpush.msra.mxu0 0.0
    %1986 = vmatpush.msra.mxu0 0.0
    %1987 = vmatpush.msra.mxu0 0.0
    %1988 = vmatpush.msra.mxu0 0.0
    %1989 = vmatpush.msra.mxu0 0.0
    %1990 = vmatpush.msra.mxu0 0.0
    %1991 = vmatpush.msra.mxu0 0.0
    %1992 = vmatpush.msra.mxu0 0.0
    %1993 = vmatpush.msra.mxu0 0.0
    %v1994 = vand.u32 %v1975, 4294901760
    %1995 = vmatpush.msra.mxu0 %v1994
    %v1996 = vand.u32 %v1974, 4294901760
    %1997 = vmatpush.msra.mxu0 %v1996
    %v1998 = vand.u32 %v1973, 4294901760
    %1999 = vmatpush.msra.mxu0 %v1998
    %v2000 = vand.u32 %v1972, 4294901760
    %2001 = vmatpush.msra.mxu0 %v2000
    %v2002 = vand.u32 %v1977, 4294901760
    %v2003 = vsub.f32 %v1977, %v2002
    %v2004 = vand.u32 %v2003, 4294901760
    %v2005 = vsub.f32 %v2003, %v2004
    %v2006 = vand.u32 %v2005, 4294901760
    %2007 = vmatmul.f32.gmra.mxu0 %v2006
    %v2008 = vpop.f32.mrf.mxu0
    %v2009 = vadd.f32 0.0, %v2008
    %v2010 = vand.u32 %v1980, 4294901760
    %v2011 = vsub.f32 %v1980, %v2010
    %v2012 = vand.u32 %v2011, 4294901760
    %v2013 = vsub.f32 %v2011, %v2012
    %v2014 = vand.u32 %v2013, 4294901760
    %2015 = vmatmul.f32.gmra.mxu0 %v2014
    %v2016 = vpop.f32.mrf.mxu0
    %v2017 = vadd.f32 0.0, %v2016
    %2018 = vdwg.mxu0
    %2019 = vmatpush.msra.mxu0 0.0
    %2020 = vmatpush.msra.mxu0 0.0
    %2021 = vmatpush.msra.mxu0 0.0
    %2022 = vmatpush.msra.mxu0 0.0
    %2023 = vmatpush.msra.mxu0 0.0
    %2024 = vmatpush.msra.mxu0 0.0
    %2025 = vmatpush.msra.mxu0 0.0
    %2026 = vmatpush.msra.mxu0 0.0
    %2027 = vmatpush.msra.mxu0 0.0
    %2028 = vmatpush.msra.mxu0 0.0
    %2029 = vmatpush.msra.mxu0 0.0
    %2030 = vmatpush.msra.mxu0 0.0
    %v2031 = vand.u32 %v1975, 4294901760
    %v2032 = vsub.f32 %v1975, %v2031
    %v2033 = vand.u32 %v2032, 4294901760
    %v2034 = vsub.f32 %v2032, %v2033
    %v2035 = vand.u32 %v2034, 4294901760
    %2036 = vmatpush.msra.mxu0 %v2035
    %v2037 = vand.u32 %v1974, 4294901760
    %v2038 = vsub.f32 %v1974, %v2037
    %v2039 = vand.u32 %v2038, 4294901760
    %v2040 = vsub.f32 %v2038, %v2039
    %v2041 = vand.u32 %v2040, 4294901760
    %2042 = vmatpush.msra.mxu0 %v2041
    %v2043 = vand.u32 %v1973, 4294901760
    %v2044 = vsub.f32 %v1973, %v2043
    %v2045 = vand.u32 %v2044, 4294901760
    %v2046 = vsub.f32 %v2044, %v2045
    %v2047 = vand.u32 %v2046, 4294901760
    %2048 = vmatpush.msra.mxu0 %v2047
    %v2049 = vand.u32 %v1972, 4294901760
    %v2050 = vsub.f32 %v1972, %v2049
    %v2051 = vand.u32 %v2050, 4294901760
    %v2052 = vsub.f32 %v2050, %v2051
    %v2053 = vand.u32 %v2052, 4294901760
    %2054 = vmatpush.msra.mxu0 %v2053
    %v2055 = vand.u32 %v1977, 4294901760
    %2056 = vmatmul.f32.gmra.mxu0 %v2055
    %v2057 = vpop.f32.mrf.mxu0
    %v2058 = vadd.f32 %v2009, %v2057
    %v2059 = vand.u32 %v1980, 4294901760
    %2060 = vmatmul.f32.gmra.mxu0 %v2059
    %v2061 = vpop.f32.mrf.mxu0
    %v2062 = vadd.f32 %v2017, %v2061
    %2063 = vdwg.mxu0
    %2064 = vmatpush.msra.mxu0 0.0
    %2065 = vmatpush.msra.mxu0 0.0
    %2066 = vmatpush.msra.mxu0 0.0
    %2067 = vmatpush.msra.mxu0 0.0
    %2068 = vmatpush.msra.mxu0 0.0
    %2069 = vmatpush.msra.mxu0 0.0
    %2070 = vmatpush.msra.mxu0 0.0
    %2071 = vmatpush.msra.mxu0 0.0
    %2072 = vmatpush.msra.mxu0 0.0
    %2073 = vmatpush.msra.mxu0 0.0
    %2074 = vmatpush.msra.mxu0 0.0
    %2075 = vmatpush.msra.mxu0 0.0
    %v2076 = vand.u32 %v1975, 4294901760
    %v2077 = vsub.f32 %v1975, %v2076
    %2078 = vmatpush.msra.mxu0 %v2077
    %v2079 = vand.u32 %v1974, 4294901760
    %v2080 = vsub.f32 %v1974, %v2079
    %2081 = vmatpush.msra.mxu0 %v2080
    %v2082 = vand.u32 %v1973, 4294901760
    %v2083 = vsub.f32 %v1973, %v2082
    %2084 = vmatpush.msra.mxu0 %v2083
    %v2085 = vand.u32 %v1972, 4294901760
    %v2086 = vsub.f32 %v1972, %v2085
    %2087 = vmatpush.msra.mxu0 %v2086
    %v2088 = vand.u32 %v1977, 4294901760
    %v2089 = vsub.f32 %v1977, %v2088
    %2090 = vmatmul.f32.gmra.mxu0 %v2089
    %v2091 = vpop.f32.mrf.mxu0
    %v2092 = vadd.f32 %v2058, %v2091
    %v2093 = vand.u32 %v1980, 4294901760
    %v2094 = vsub.f32 %v1980, %v2093
    %2095 = vmatmul.f32.gmra.mxu0 %v2094
    %v2096 = vpop.f32.mrf.mxu0
    %v2097 = vadd.f32 %v2062, %v2096
    %2098 = vdwg.mxu0
    %2099 = vmatpush.msra.mxu0 0.0
    %2100 = vmatpush.msra.mxu0 0.0
    %2101 = vmatpush.msra.mxu0 0.0
    %2102 = vmatpush.msra.mxu0 0.0
    %2103 = vmatpush.msra.mxu0 0.0
    %2104 = vmatpush.msra.mxu0 0.0
    %2105 = vmatpush.msra.mxu0 0.0
    %2106 = vmatpush.msra.mxu0 0.0
    %2107 = vmatpush.msra.mxu0 0.0
    %2108 = vmatpush.msra.mxu0 0.0
    %2109 = vmatpush.msra.mxu0 0.0
    %2110 = vmatpush.msra.mxu0 0.0
    %v2111 = vand.u32 %v1975, 4294901760
    %2112 = vmatpush.msra.mxu0 %v2111
    %v2113 = vand.u32 %v1974, 4294901760
    %2114 = vmatpush.msra.mxu0 %v2113
    %v2115 = vand.u32 %v1973, 4294901760
    %2116 = vmatpush.msra.mxu0 %v2115
    %v2117 = vand.u32 %v1972, 4294901760
    %2118 = vmatpush.msra.mxu0 %v2117
    %v2119 = vand.u32 %v1977, 4294901760
    %v2120 = vsub.f32 %v1977, %v2119
    %v2121 = vand.u32 %v2120, 4294901760
    %2122 = vmatmul.f32.gmra.mxu0 %v2121
    %v2123 = vpop.f32.mrf.mxu0
    %v2124 = vadd.f32 %v2092, %v2123
    %v2125 = vand.u32 %v1980, 4294901760
    %v2126 = vsub.f32 %v1980, %v2125
    %v2127 = vand.u32 %v2126, 4294901760
    %2128 = vmatmul.f32.gmra.mxu0 %v2127
    %v2129 = vpop.f32.mrf.mxu0
    %v2130 = vadd.f32 %v2097, %v2129
    %2131 = vdwg.mxu0
    %2132 = vmatpush.msra.mxu0 0.0
    %2133 = vmatpush.msra.mxu0 0.0
    %2134 = vmatpush.msra.mxu0 0.0
    %2135 = vmatpush.msra.mxu0 0.0
    %2136 = vmatpush.msra.mxu0 0.0
    %2137 = vmatpush.msra.mxu0 0.0
    %2138 = vmatpush.msra.mxu0 0.0
    %2139 = vmatpush.msra.mxu0 0.0
    %2140 = vmatpush.msra.mxu0 0.0
    %2141 = vmatpush.msra.mxu0 0.0
    %2142 = vmatpush.msra.mxu0 0.0
    %2143 = vmatpush.msra.mxu0 0.0
    %v2144 = vand.u32 %v1975, 4294901760
    %v2145 = vsub.f32 %v1975, %v2144
    %v2146 = vand.u32 %v2145, 4294901760
    %2147 = vmatpush.msra.mxu0 %v2146
    %v2148 = vand.u32 %v1974, 4294901760
    %v2149 = vsub.f32 %v1974, %v2148
    %v2150 = vand.u32 %v2149, 4294901760
    %2151 = vmatpush.msra.mxu0 %v2150
    %v2152 = vand.u32 %v1973, 4294901760
    %v2153 = vsub.f32 %v1973, %v2152
    %v2154 = vand.u32 %v2153, 4294901760
    %2155 = vmatpush.msra.mxu0 %v2154
    %v2156 = vand.u32 %v1972, 4294901760
    %v2157 = vsub.f32 %v1972, %v2156
    %v2158 = vand.u32 %v2157, 4294901760
    %2159 = vmatpush.msra.mxu0 %v2158
    %v2160 = vand.u32 %v1977, 4294901760
    %2161 = vmatmul.f32.gmra.mxu0 %v2160
    %v2162 = vpop.f32.mrf.mxu0
    %v2163 = vadd.f32 %v2124, %v2162
    %v2164 = vand.u32 %v1980, 4294901760
    %2165 = vmatmul.f32.gmra.mxu0 %v2164
    %v2166 = vpop.f32.mrf.mxu0
    %v2167 = vadd.f32 %v2130, %v2166
    %2168 = vdwg.mxu0
    %2169 = vmatpush.msra.mxu0 0.0
    %2170 = vmatpush.msra.mxu0 0.0
    %2171 = vmatpush.msra.mxu0 0.0
    %2172 = vmatpush.msra.mxu0 0.0
    %2173 = vmatpush.msra.mxu0 0.0
    %2174 = vmatpush.msra.mxu0 0.0
    %2175 = vmatpush.msra.mxu0 0.0
    %2176 = vmatpush.msra.mxu0 0.0
    %2177 = vmatpush.msra.mxu0 0.0
    %2178 = vmatpush.msra.mxu0 0.0
    %2179 = vmatpush.msra.mxu0 0.0
    %2180 = vmatpush.msra.mxu0 0.0
    %v2181 = vand.u32 %v1975, 4294901760
    %2182 = vmatpush.msra.mxu0 %v2181
    %v2183 = vand.u32 %v1974, 4294901760
    %2184 = vmatpush.msra.mxu0 %v2183
    %v2185 = vand.u32 %v1973, 4294901760
    %2186 = vmatpush.msra.mxu0 %v2185
    %v2187 = vand.u32 %v1972, 4294901760
    %2188 = vmatpush.msra.mxu0 %v2187
    %v2189 = vand.u32 %v1977, 4294901760
    %2190 = vmatmul.f32.gmra.mxu0 %v2189
    %v2191 = vpop.f32.mrf.mxu0
    %v2192 = vadd.f32 %v2163, %v2191
    %v2193 = vand.u32 %v1980, 4294901760
    %2194 = vmatmul.f32.gmra.mxu0 %v2193
    %v2195 = vpop.f32.mrf.mxu0
    %v2196 = vadd.f32 %v2167, %v2195
    %2197 = vdwg.mxu0
    %s2198 = scalar_lea.vmem %s3, 64
    %2199 = vst [vmem:[%s2198] sm:$0xff] %v2192
    %2200 = vst [vmem:[%s2198 + $0x8] sm:$0xff] %v2196
    %2201 = vmatpush.xpose.msra.mxu0 0.0
    %2202 = vmatpush.xpose.msra.mxu0 0.0
    %2203 = vmatpush.xpose.msra.mxu0 0.0
    %2204 = vmatpush.xpose.msra.mxu0 0.0
    %2205 = vmatpush.xpose.msra.mxu0 0.0
    %2206 = vmatpush.xpose.msra.mxu0 0.0
    %2207 = vmatpush.xpose.msra.mxu0 0.0
    %2208 = vmatpush.xpose.msra.mxu0 0.0
    %2209 = vmatpush.xpose.msra.mxu0 0.0
    %2210 = vmatpush.xpose.msra.mxu0 0.0
    %2211 = vmatpush.xpose.msra.mxu0 0.0
    %2212 = vmatpush.xpose.msra.mxu0 0.0
    %2213 = vmatpush.xpose.msra.mxu0 0.0
    %2214 = vmatpush.xpose.msra.mxu0 0.0
    %v2215 = vand.u32 %v2196, 4294901760
    %2216 = vmatpush.xpose.msra.mxu0 %v2215
    %v2217 = vand.u32 %v2192, 4294901760
    %2218 = vmatpush.xpose.msra.mxu0 %v2217
    %v2219 = vand.u32 %v2192, 4294901760
    %v2220 = vsub.f32 %v2192, %v2219
    %v2221 = vand.u32 %v2220, 4294901760
    %v2222 = vsub.f32 %v2220, %v2221
    %v2223 = vand.u32 %v2222, 4294901760
    %2224 = vmatmul.f32.gmra.mxu0 %v2223
    %v2225 = vpop.f32.mrf.mxu0
    %v2226 = vadd.f32 0.0, %v2225
    %v2227 = vand.u32 %v2196, 4294901760
    %v2228 = vsub.f32 %v2196, %v2227
    %v2229 = vand.u32 %v2228, 4294901760
    %v2230 = vsub.f32 %v2228, %v2229
    %v2231 = vand.u32 %v2230, 4294901760
    %2232 = vmatmul.f32.gmra.mxu0 %v2231
    %v2233 = vpop.f32.mrf.mxu0
    %v2234 = vadd.f32 0.0, %v2233
    %2235 = vdwg.mxu0
    %2236 = vmatpush.xpose.msra.mxu0 0.0
    %2237 = vmatpush.xpose.msra.mxu0 0.0
    %2238 = vmatpush.xpose.msra.mxu0 0.0
    %2239 = vmatpush.xpose.msra.mxu0 0.0
    %2240 = vmatpush.xpose.msra.mxu0 0.0
    %2241 = vmatpush.xpose.msra.mxu0 0.0
    %2242 = vmatpush.xpose.msra.mxu0 0.0
    %2243 = vmatpush.xpose.msra.mxu0 0.0
    %2244 = vmatpush.xpose.msra.mxu0 0.0
    %2245 = vmatpush.xpose.msra.mxu0 0.0
    %2246 = vmatpush.xpose.msra.mxu0 0.0
    %2247 = vmatpush.xpose.msra.mxu0 0.0
    %2248 = vmatpush.xpose.msra.mxu0 0.0
    %2249 = vmatpush.xpose.msra.mxu0 0.0
    %v2250 = vand.u32 %v2196, 4294901760
    %v2251 = vsub.f32 %v2196, %v2250
    %v2252 = vand.u32 %v2251, 4294901760
    %v2253 = vsub.f32 %v2251, %v2252
    %v2254 = vand.u32 %v2253, 4294901760
    %2255 = vmatpush.xpose.msra.mxu0 %v2254
    %v2256 = vand.u32 %v2192, 4294901760
    %v2257 = vsub.f32 %v2192, %v2256
    %v2258 = vand.u32 %v2257, 4294901760
    %v2259 = vsub.f32 %v2257, %v2258
    %v2260 = vand.u32 %v2259, 4294901760
    %2261 = vmatpush.xpose.msra.mxu0 %v2260
    %v2262 = vand.u32 %v2192, 4294901760
    %2263 = vmatmul.f32.gmra.mxu0 %v2262
    %v2264 = vpop.f32.mrf.mxu0
    %v2265 = vadd.f32 %v2226, %v2264
    %v2266 = vand.u32 %v2196, 4294901760
    %2267 = vmatmul.f32.gmra.mxu0 %v2266
    %v2268 = vpop.f32.mrf.mxu0
    %v2269 = vadd.f32 %v2234, %v2268
    %2270 = vdwg.mxu0
    %2271 = vmatpush.xpose.msra.mxu0 0.0
    %2272 = vmatpush.xpose.msra.mxu0 0.0
    %2273 = vmatpush.xpose.msra.mxu0 0.0
    %2274 = vmatpush.xpose.msra.mxu0 0.0
    %2275 = vmatpush.xpose.msra.mxu0 0.0
    %2276 = vmatpush.xpose.msra.mxu0 0.0
    %2277 = vmatpush.xpose.msra.mxu0 0.0
    %2278 = vmatpush.xpose.msra.mxu0 0.0
    %2279 = vmatpush.xpose.msra.mxu0 0.0
    %2280 = vmatpush.xpose.msra.mxu0 0.0
    %2281 = vmatpush.xpose.msra.mxu0 0.0
    %2282 = vmatpush.xpose.msra.mxu0 0.0
    %2283 = vmatpush.xpose.msra.mxu0 0.0
    %2284 = vmatpush.xpose.msra.mxu0 0.0
    %v2285 = vand.u32 %v2196, 4294901760
    %v2286 = vsub.f32 %v2196, %v2285
    %2287 = vmatpush.xpose.msra.mxu0 %v2286
    %v2288 = vand.u32 %v2192, 4294901760
    %v2289 = vsub.f32 %v2192, %v2288
    %2290 = vmatpush.xpose.msra.mxu0 %v2289
    %v2291 = vand.u32 %v2192, 4294901760
    %v2292 = vsub.f32 %v2192, %v2291
    %2293 = vmatmul.f32.gmra.mxu0 %v2292
    %v2294 = vpop.f32.mrf.mxu0
    %v2295 = vadd.f32 %v2265, %v2294
    %v2296 = vand.u32 %v2196, 4294901760
    %v2297 = vsub.f32 %v2196, %v2296
    %2298 = vmatmul.f32.gmra.mxu0 %v2297
    %v2299 = vpop.f32.mrf.mxu0
    %v2300 = vadd.f32 %v2269, %v2299
    %2301 = vdwg.mxu0
    %2302 = vmatpush.xpose.msra.mxu0 0.0
    %2303 = vmatpush.xpose.msra.mxu0 0.0
    %2304 = vmatpush.xpose.msra.mxu0 0.0
    %2305 = vmatpush.xpose.msra.mxu0 0.0
    %2306 = vmatpush.xpose.msra.mxu0 0.0
    %2307 = vmatpush.xpose.msra.mxu0 0.0
    %2308 = vmatpush.xpose.msra.mxu0 0.0
    %2309 = vmatpush.xpose.msra.mxu0 0.0
    %2310 = vmatpush.xpose.msra.mxu0 0.0
    %2311 = vmatpush.xpose.msra.mxu0 0.0
    %2312 = vmatpush.xpose.msra.mxu0 0.0
    %2313 = vmatpush.xpose.msra.mxu0 0.0
    %2314 = vmatpush.xpose.msra.mxu0 0.0
    %2315 = vmatpush.xpose.msra.mxu0 0.0
    %v2316 = vand.u32 %v2196, 4294901760
    %2317 = vmatpush.xpose.msra.mxu0 %v2316
    %v2318 = vand.u32 %v2192, 4294901760
    %2319 = vmatpush.xpose.msra.mxu0 %v2318
    %v2320 = vand.u32 %v2192, 4294901760
    %v2321 = vsub.f32 %v2192, %v2320
    %v2322 = vand.u32 %v2321, 4294901760
    %2323 = vmatmul.f32.gmra.mxu0 %v2322
    %v2324 = vpop.f32.mrf.mxu0
    %v2325 = vadd.f32 %v2295, %v2324
    %v2326 = vand.u32 %v2196, 4294901760
    %v2327 = vsub.f32 %v2196, %v2326
    %v2328 = vand.u32 %v2327, 4294901760
    %2329 = vmatmul.f32.gmra.mxu0 %v2328
    %v2330 = vpop.f32.mrf.mxu0
    %v2331 = vadd.f32 %v2300, %v2330
    %2332 = vdwg.mxu0
    %2333 = vmatpush.xpose.msra.mxu0 0.0
    %2334 = vmatpush.xpose.msra.mxu0 0.0
    %2335 = vmatpush.xpose.msra.mxu0 0.0
    %2336 = vmatpush.xpose.msra.mxu0 0.0
    %2337 = vmatpush.xpose.msra.mxu0 0.0
    %2338 = vmatpush.xpose.msra.mxu0 0.0
    %2339 = vmatpush.xpose.msra.mxu0 0.0
    %2340 = vmatpush.xpose.msra.mxu0 0.0
    %2341 = vmatpush.xpose.msra.mxu0 0.0
    %2342 = vmatpush.xpose.msra.mxu0 0.0
    %2343 = vmatpush.xpose.msra.mxu0 0.0
    %2344 = vmatpush.xpose.msra.mxu0 0.0
    %2345 = vmatpush.xpose.msra.mxu0 0.0
    %2346 = vmatpush.xpose.msra.mxu0 0.0
    %v2347 = vand.u32 %v2196, 4294901760
    %v2348 = vsub.f32 %v2196, %v2347
    %v2349 = vand.u32 %v2348, 4294901760
    %2350 = vmatpush.xpose.msra.mxu0 %v2349
    %v2351 = vand.u32 %v2192, 4294901760
    %v2352 = vsub.f32 %v2192, %v2351
    %v2353 = vand.u32 %v2352, 4294901760
    %2354 = vmatpush.xpose.msra.mxu0 %v2353
    %v2355 = vand.u32 %v2192, 4294901760
    %2356 = vmatmul.f32.gmra.mxu0 %v2355
    %v2357 = vpop.f32.mrf.mxu0
    %v2358 = vadd.f32 %v2325, %v2357
    %v2359 = vand.u32 %v2196, 4294901760
    %2360 = vmatmul.f32.gmra.mxu0 %v2359
    %v2361 = vpop.f32.mrf.mxu0
    %v2362 = vadd.f32 %v2331, %v2361
    %2363 = vdwg.mxu0
    %2364 = vmatpush.xpose.msra.mxu0 0.0
    %2365 = vmatpush.xpose.msra.mxu0 0.0
    %2366 = vmatpush.xpose.msra.mxu0 0.0
    %2367 = vmatpush.xpose.msra.mxu0 0.0
    %2368 = vmatpush.xpose.msra.mxu0 0.0
    %2369 = vmatpush.xpose.msra.mxu0 0.0
    %2370 = vmatpush.xpose.msra.mxu0 0.0
    %2371 = vmatpush.xpose.msra.mxu0 0.0
    %2372 = vmatpush.xpose.msra.mxu0 0.0
    %2373 = vmatpush.xpose.msra.mxu0 0.0
    %2374 = vmatpush.xpose.msra.mxu0 0.0
    %2375 = vmatpush.xpose.msra.mxu0 0.0
    %2376 = vmatpush.xpose.msra.mxu0 0.0
    %2377 = vmatpush.xpose.msra.mxu0 0.0
    %v2378 = vand.u32 %v2196, 4294901760
    %2379 = vmatpush.xpose.msra.mxu0 %v2378
    %v2380 = vand.u32 %v2192, 4294901760
    %2381 = vmatpush.xpose.msra.mxu0 %v2380
    %v2382 = vand.u32 %v2192, 4294901760
    %2383 = vmatmul.f32.gmra.mxu0 %v2382
    %v2384 = vpop.f32.mrf.mxu0
    %v2385 = vadd.f32 %v2358, %v2384
    %v2386 = vand.u32 %v2196, 4294901760
    %2387 = vmatmul.f32.gmra.mxu0 %v2386
    %v2388 = vpop.f32.mrf.mxu0
    %v2389 = vadd.f32 %v2362, %v2388
    %2390 = vdwg.mxu0
    %v2391 = vsub.f32 0.0, %v2385
    %v2392 = vsub.f32 0.0, %v2389
    %v2393 = vmul.f32 %v2391, 1.442695
    %v2394 = vpow.pop %v2393
    %v2395 = vmul.f32 %v2392, 1.442695
    %v2396 = vpow.pop %v2395
    %v2397 = vadd.f32 %v2394, 1.0
    %v2398 = vadd.f32 %v2396, 1.0
    %v2399 = vrcp.pop %v2397
    %v2400 = vmul.f32 %v2397, %v2399
    %v2401 = vsub.f32 1.0, %v2400
    %v2402 = vmul.f32 %v2399, %v2401
    %v2403 = vadd.f32 %v2399, %v2402
    %vm2404 = vweird.f32 %v2397
    %vm2405 = vweird.f32 %v2399
    %vm2406 = vmor %vm2404, %vm2405
    %v2407 = vsel %vm2406, %v2399, %v2403
    %v2408 = vand.u32 2147483647, %v2397
    %vm2409 = vcmp.eq.f32.partialorder %v2408, 8.507059e+37
    %v2410 = vand.u32 %v2397, 2147483648
    %v2411 = vor.u32 1.1754944e-38, %v2410
    %v2412 = vsel %vm2409, %v2411, %v2407
    %v2413 = vmul.f32 1.0, %v2412
    %v2414 = vrcp.pop %v2398
    %v2415 = vmul.f32 %v2398, %v2414
    %v2416 = vsub.f32 1.0, %v2415
    %v2417 = vmul.f32 %v2414, %v2416
    %v2418 = vadd.f32 %v2414, %v2417
    %vm2419 = vweird.f32 %v2398
    %vm2420 = vweird.f32 %v2414
    %vm2421 = vmor %vm2419, %vm2420
    %v2422 = vsel %vm2421, %v2414, %v2418
    %v2423 = vand.u32 2147483647, %v2398
    %vm2424 = vcmp.eq.f32.partialorder %v2423, 8.507059e+37
    %v2425 = vand.u32 %v2398, 2147483648
    %v2426 = vor.u32 1.1754944e-38, %v2425
    %v2427 = vsel %vm2424, %v2426, %v2422
    %v2428 = vmul.f32 1.0, %v2427
    %2429 = vst.msk [vmem:[#allocation5] sm:$0xff] %vm37, %v2413
    %2430 = vst.msk [vmem:[#allocation5 + $0x8] sm:$0xff] %vm37, %v2428
    // Predicated region
    $region18: #{_gcn_forward_padded.1} parent=1 // pred_check
      _
    $region19: #{_gcn_forward_padded.1} parent=1 // pred_check_branch
      %2432 = sbr.rel (0) target = $region21
    $region20: #{_gcn_forward_padded.1} parent=1 // pred_region
      _
    $region21: #{_gcn_forward_padded.1} parent=1 // pred_fallthru
      _
    // Predicated region
    $region22: #{_gcn_forward_padded.1} parent=1 // pred_check
      _
    $region23: #{_gcn_forward_padded.1} parent=1 // pred_check_branch
      %2434 = sbr.rel (0) target = $region25
    $region24: #{_gcn_forward_padded.1} parent=1 // pred_region
      %2436 = vsyncadd [#allocation4], 0
      %s2437 = sshll.u32 [#allocation5], 4
      %s2438 = int_to_ptr.vmem [resolvable:$true] %s2437
      %s2439 = sshll.u32 %s4, 4
      %s2440 = int_to_ptr.hbm [resolvable:$true] %s2439
      %2445 = dma.vmem_to_hbm [thread:$0]  %s2438, 256, %s2440, [#allocation4], 128, 128, 8
    $region25: #{_gcn_forward_padded.1} parent=1 // pred_fallthru
      _
    // Predicated region
    $region26: #{_gcn_forward_padded.1} parent=1 // pred_check
      _
    $region27: #{_gcn_forward_padded.1} parent=1 // pred_check_branch
      %2447 = sbr.rel (0) target = $region29
    $region28: #{_gcn_forward_padded.1} parent=1 // pred_region
      _
    $region29: #{_gcn_forward_padded.1} parent=1 // pred_fallthru
      _
    // Predicated region
    $region30: #{_gcn_forward_padded.1} parent=1 // pred_check
      _
    $region31: #{_gcn_forward_padded.1} parent=1 // pred_check_branch
      %2449 = sbr.rel (0) target = $region33
    $region32: #{_gcn_forward_padded.1} parent=1 // pred_region
      %2451 = dma.done [#allocation4], 256
    $region33: #{_gcn_forward_padded.1} parent=1 // pred_fallthru
      _
    %2452 = vsyncpa [#allocation3], 1
    %2453 = vsyncpa [#allocation4], 1

</llo_original>
